<compile_context>
chip_gen: v5e
topology: v5e:2x2
jax: 0.10.0
libtpu: 0.0.40
codegen_flags: <defaults>
</compile_context>

<pallas_src>
import functools

import jax
import jax.numpy as jnp
from jax.experimental import pallas as pl
from jax.experimental.pallas import tpu as pltpu


_TN_MAX = 4096  # max lane-columns per grid step (a (C, 4096) f32 tile is tiny)


def _round_up(n, m):
    return ((n + m - 1) // m) * m


def _col_tiling(N):
    tn = min(_TN_MAX, _round_up(N, 128))
    Np = _round_up(N, tn)
    return tn, Np


# ----------------------------------------------------------------------------
# Pallas kernels (channels-first: y = W^T @ x, outputs are (Cout, tn) lane-dense)
# ----------------------------------------------------------------------------

def _linear_kernel(x_ref, w_ref, b_ref, o_ref, *, relu):
    y = jnp.dot(w_ref[...], x_ref[...], preferred_element_type=jnp.float32)
    y = y + b_ref[...]
    if relu:
        y = jnp.maximum(y, 0.0)
    o_ref[...] = y.astype(o_ref.dtype)


def linear_cn_pallas(x, wT, b, *, relu):
    """y = relu?(wT @ x + b);  x: (Cin, N), wT: (Cout, Cin), b: (Cout,)."""
    Cin, N = x.shape
    Cout = wT.shape[0]
    tn, Np = _col_tiling(N)
    if Np != N:
        x = jnp.pad(x, ((0, 0), (0, Np - N)))
    bcol = b.reshape(Cout, 1).astype(jnp.float32)
    out = pl.pallas_call(
        functools.partial(_linear_kernel, relu=relu),
        out_shape=jax.ShapeDtypeStruct((Cout, Np), jnp.float32),
        grid=(Np // tn,),
        in_specs=[
            pl.BlockSpec((Cin, tn), lambda i: (0, i)),
            pl.BlockSpec((Cout, Cin), lambda i: (0, 0)),
            pl.BlockSpec((Cout, 1), lambda i: (0, 0)),
        ],
        out_specs=pl.BlockSpec((Cout, tn), lambda i: (0, i)),
        compiler_params=pltpu.CompilerParams(dimension_semantics=("parallel",)),
    )(x, wT, bcol)
    return out[:, :N] if Np != N else out


def _mix_kernel(x_ref, s_ref, w_ref, b_ref, o_ref, *, relu):
    # (1x1 conv as matmul) + bias + spectral-branch residual, optional ReLU.
    y = jnp.dot(w_ref[...], x_ref[...], preferred_element_type=jnp.float32)
    y = y + b_ref[...] + s_ref[...]
    if relu:
        y = jnp.maximum(y, 0.0)
    o_ref[...] = y.astype(o_ref.dtype)


def fourier_mix_pallas(x, spec, wT, b, *, relu):
    """relu?(wT @ x + b + spec);  x, spec: (C, N), wT: (C, C), b: (C,)."""
    C, N = x.shape
    tn, Np = _col_tiling(N)
    if Np != N:
        pad = ((0, 0), (0, Np - N))
        x = jnp.pad(x, pad)
        spec = jnp.pad(spec, pad)
    bcol = b.reshape(C, 1).astype(jnp.float32)
    out = pl.pallas_call(
        functools.partial(_mix_kernel, relu=relu),
        out_shape=jax.ShapeDtypeStruct((C, Np), jnp.float32),
        grid=(Np // tn,),
        in_specs=[
            pl.BlockSpec((C, tn), lambda i: (0, i)),
            pl.BlockSpec((C, tn), lambda i: (0, i)),
            pl.BlockSpec((C, C), lambda i: (0, 0)),
            pl.BlockSpec((C, 1), lambda i: (0, 0)),
        ],
        out_specs=pl.BlockSpec((C, tn), lambda i: (0, i)),
        compiler_params=pltpu.CompilerParams(dimension_semantics=("parallel",)),
    )(x, spec, wT, bcol)
    return out[:, :N] if Np != N else out


def _tail_kernel(x_ref, s_ref, w3_ref, b3_ref, w1_ref, b1_ref, w2_ref, b2_ref,
                 o_ref):
    # Fused layer-3 mix (no ReLU) + fc1 + ReLU + fc2.
    # Neither the (C, tn) layer-3 output nor the (128, tn) fc1 activation
    # leaves VMEM.
    z = jnp.dot(w3_ref[...], x_ref[...], preferred_element_type=jnp.float32)
    z = z + b3_ref[...] + s_ref[...]
    h = jnp.dot(w1_ref[...], z, preferred_element_type=jnp.float32) + b1_ref[...]
    h = jnp.maximum(h, 0.0)
    y = jnp.dot(w2_ref[...], h, preferred_element_type=jnp.float32) + b2_ref[...]
    o_ref[...] = y.astype(o_ref.dtype)


def tail_cn_pallas(x, spec, w3T, b3, w1T, b1, w2T, b2):
    """fc2(relu(fc1(w3T @ x + b3 + spec)));  x, spec: (C, N) -> (1, N)."""
    C, N = x.shape
    Ch = w1T.shape[0]
    Co = w2T.shape[0]
    tn, Np = _col_tiling(N)
    if Np != N:
        pad = ((0, 0), (0, Np - N))
        x = jnp.pad(x, pad)
        spec = jnp.pad(spec, pad)
    out = pl.pallas_call(
        _tail_kernel,
        out_shape=jax.ShapeDtypeStruct((Co, Np), jnp.float32),
        grid=(Np // tn,),
        in_specs=[
            pl.BlockSpec((C, tn), lambda i: (0, i)),
            pl.BlockSpec((C, tn), lambda i: (0, i)),
            pl.BlockSpec((C, C), lambda i: (0, 0)),
            pl.BlockSpec((C, 1), lambda i: (0, 0)),
            pl.BlockSpec((Ch, C), lambda i: (0, 0)),
            pl.BlockSpec((Ch, 1), lambda i: (0, 0)),
            pl.BlockSpec((Co, Ch), lambda i: (0, 0)),
            pl.BlockSpec((Co, 1), lambda i: (0, 0)),
        ],
        out_specs=pl.BlockSpec((Co, tn), lambda i: (0, i)),
        compiler_params=pltpu.CompilerParams(dimension_semantics=("parallel",)),
    )(x, spec,
      w3T, b3.reshape(C, 1).astype(jnp.float32),
      w1T, b1.reshape(Ch, 1).astype(jnp.float32),
      w2T, b2.reshape(Co, 1).astype(jnp.float32))
    return out[:, :N] if Np != N else out


def _spectral_mul_kernel(a_ref, w_ref, o_ref):
    # Packed complex matmul for ALL Fourier modes in one grid step:
    #   a: (M, B, 2*Cin) = [re | im]
    #   w: (M, 2*Cin, 2*Cout) = [[wr, wi], [-wi, wr]]   (precomputed once)
    #   a @ w = [re_out | im_out]     -> one MXU push per mode.
    o_ref[...] = jnp.einsum(
        'mbk,mkn->mbn', a_ref[...], w_ref[...],
        preferred_element_type=jnp.float32).astype(o_ref.dtype)


def spectral_mul_pallas(a_packed, w_packed):
    M, B, _ = a_packed.shape
    N2 = w_packed.shape[2]
    # Whole problem is a few hundred KB -> single kernel invocation, no grid.
    return pl.pallas_call(
        _spectral_mul_kernel,
        out_shape=jax.ShapeDtypeStruct((M, B, N2), jnp.float32),
    )(a_packed, w_packed)


# ----------------------------------------------------------------------------
# SpectralConv2d (FFT glue in JAX, complex mode-mixing in Pallas)
# ----------------------------------------------------------------------------

def spectral_conv2d_pallas(h_cn, B, H, W, w_packed, m1, m2):
    """h_cn: (C, B*H*W) f32; w_packed: (2*m1*m2, 2*C, 2*Cout) packed complex."""
    C = h_cn.shape[0]
    Cout = w_packed.shape[2] // 2
    Wf = W // 2 + 1
    assert H >= 2 * m1 and Wf >= m2

    h4 = h_cn.reshape(C, B, H, W)                          # channels-first, free
    x_ft = jnp.fft.rfft2(h4, axes=(2, 3))                  # (C, B, H, Wf) c64
    top = x_ft[:, :, :m1, :m2]
    bot = x_ft[:, :, H - m1:, :m2]
    a = jnp.stack([top, bot], axis=0)                      # (2, C, B, m1, m2)
    a = jnp.transpose(a, (0, 3, 4, 2, 1)).reshape(2 * m1 * m2, B, C)
    a_packed = jnp.concatenate(
        [jnp.real(a), jnp.imag(a)], axis=-1).astype(jnp.float32)  # (M, B, 2C)

    o = spectral_mul_pallas(a_packed, w_packed)            # (M, B, 2*Cout)
    oc = o[..., :Cout] + 1j * o[..., Cout:]                # (M, B, Cout) c64
    oc = jnp.transpose(oc.reshape(2, m1, m2, B, Cout), (0, 4, 3, 1, 2))

    # Assemble out_ft with concat + pad (no full-array scatter updates).
    mid = jnp.zeros((Cout, B, H - 2 * m1, m2), jnp.complex64)
    col = jnp.concatenate([oc[0], mid, oc[1]], axis=2)     # (Cout, B, H, m2)
    out_ft = jnp.pad(col, ((0, 0), (0, 0), (0, 0), (0, Wf - m2)))
    y = jnp.fft.irfft2(out_ft, s=(H, W), axes=(2, 3)).astype(jnp.float32)
    return y.reshape(Cout, B * H * W)


# ----------------------------------------------------------------------------
# FNO2d forward (Pallas path)
# ----------------------------------------------------------------------------

def fno2d_forward(x, prepped, modes1, modes2, width):
    """x: (B, S, S, 3) float32 -> (B, S, S, 1) float32."""
    B, H, W, _ = x.shape
    N = B * H * W

    # fc0: lift 3 -> width (input channels zero-padded 3 -> 8); (8, N) layout.
    xt = jnp.pad(x.reshape(N, 3).T, ((0, 5), (0, 0)))
    h = linear_cn_pallas(xt, prepped['fc0_wT8'], prepped['fc0_b'], relu=False)

    # Fourier layers 0-2: relu(SpectralConv(h) + Conv1d_1x1(h)).
    for layer in range(3):
        spec = spectral_conv2d_pallas(h, B, H, W, prepped[f'conv{layer}_wp'],
                                      modes1, modes2)
        h = fourier_mix_pallas(h, spec, prepped[f'w{layer}_wT'],
                               prepped[f'w{layer}_b'], relu=True)

    # Layer 3 (no ReLU) fused with fc1(+ReLU)+fc2 head.
    spec = spectral_conv2d_pallas(h, B, H, W, prepped['conv3_wp'],
                                  modes1, modes2)
    out = tail_cn_pallas(h, spec, prepped['w3_wT'], prepped['w3_b'],
                         prepped['fc1_wT'], prepped['fc1_b'],
                         prepped['fc2_wT'], prepped['fc2_b'])   # (1, N)
    return out.reshape(B, H, W, 1)


# ----------------------------------------------------------------------------
# Parameter init (shapes from FNO2d.__init__) + one-time repacking
# ----------------------------------------------------------------------------

def init_params(key, modes1, modes2, width):
    keys = jax.random.split(key, 32)
    k = iter(keys)
    p = {}

    def u(kk, shape, scale):
        return (jax.random.uniform(kk, shape, jnp.float32) * scale).astype(jnp.float32)

    # fc0: Linear(3, width) stored as (in, out) for x @ W
    p['fc0_w'] = u(next(k), (3, width), 0.5)
    p['fc0_b'] = u(next(k), (width,), 0.1)
    scale = 1.0 / (width * width)
    for layer in range(4):
        # spectral weights: index 0 = weights1, index 1 = weights2 (cfloat)
        p[f'conv{layer}_re'] = u(next(k), (2, width, width, modes1, modes2), scale)
        p[f'conv{layer}_im'] = u(next(k), (2, width, width, modes1, modes2), scale)
        # 1x1 Conv1d(width, width) as (in, out) matmul + bias
        p[f'w{layer}_w'] = u(next(k), (width, width), 0.2)
        p[f'w{layer}_b'] = u(next(k), (width,), 0.1)
    p['fc1_w'] = u(next(k), (width, 128), 0.2)
    p['fc1_b'] = u(next(k), (128,), 0.1)
    p['fc2_w'] = u(next(k), (128, 1), 0.2)
    p['fc2_b'] = u(next(k), (1,), 0.1)
    return p


def prepare_params(params, modes1, modes2, width):
    """One-time parameter repacking, hoisted out of the per-step forward."""
    p = dict(params)
    # Channels-first weights: y = W^T @ x.  fc0 Cin zero-padded 3 -> 8.
    p['fc0_wT8'] = jnp.pad(params['fc0_w'], ((0, 5), (0, 0))).T   # (width, 8)
    for layer in range(4):
        p[f'w{layer}_wT'] = params[f'w{layer}_w'].T               # (width, width)
    p['fc1_wT'] = params['fc1_w'].T                               # (128, width)
    p['fc2_wT'] = params['fc2_w'].T                               # (1, 128)

    M = 2 * modes1 * modes2
    for layer in range(4):
        wr = jnp.transpose(params[f'conv{layer}_re'], (0, 3, 4, 1, 2)).reshape(M, width, width)
        wi = jnp.transpose(params[f'conv{layer}_im'], (0, 3, 4, 1, 2)).reshape(M, width, width)
        # packed complex weight: (M, 2*Cin, 2*Cout) = [[wr, wi], [-wi, wr]]
        p[f'conv{layer}_wp'] = jnp.concatenate(
            [jnp.concatenate([wr, wi], axis=2),
             jnp.concatenate([-wi, wr], axis=2)], axis=1)
    return p


# ----------------------------------------------------------------------------
# Pure-JAX reference (mirrors the PyTorch forward, channels-first FFT)
# ----------------------------------------------------------------------------

def _spectral_conv2d_ref(h_nchw, w_re, w_im, m1, m2):
    B, C, H, W = h_nchw.shape
    Cout = w_re.shape[2]
    Wf = W // 2 + 1
    x_ft = jnp.fft.rfft2(h_nchw, axes=(2, 3))
    w1 = w_re[0] + 1j * w_im[0]
    w2 = w_re[1] + 1j * w_im[1]
    out_ft = jnp.zeros((B, Cout, H, Wf), jnp.complex64)
    out_ft = out_ft.at[:, :, :m1, :m2].set(
        jnp.einsum('bixy,ioxy->boxy', x_ft[:, :, :m1, :m2], w1))
    out_ft = out_ft.at[:, :, H - m1:, :m2].set(
        jnp.einsum('bixy,ioxy->boxy', x_ft[:, :, H - m1:, :m2], w2))
    return jnp.fft.irfft2(out_ft, s=(H, W), axes=(2, 3)).astype(jnp.float32)


def fno2d_reference(x, params, modes1, modes2, width):
    B, H, W, _ = x.shape
    h = x.reshape(-1, 3) @ params['fc0_w'] + params['fc0_b']
    h = h.reshape(B, H, W, width)
    for layer in range(4):
        h_cf = jnp.transpose(h, (0, 3, 1, 2))
        spec = _spectral_conv2d_ref(h_cf, params[f'conv{layer}_re'],
                                    params[f'conv{layer}_im'], modes1, modes2)
        spec = jnp.transpose(spec, (0, 2, 3, 1))
        y = (h.reshape(-1, width) @ params[f'w{layer}_w'] + params[f'w{layer}_b']
             + spec.reshape(-1, width))
        if layer != 3:
            y = jnp.maximum(y, 0.0)
        h = y.reshape(B, H, W, width)
    h = jnp.maximum(h.reshape(-1, width) @ params['fc1_w'] + params['fc1_b'], 0.0)
    h = h @ params['fc2_w'] + params['fc2_b']
    return h.reshape(B, H, W, 1)


# ----------------------------------------------------------------------------
# Main
# ----------------------------------------------------------------------------

if __name__ == "__main__":
    B, S = 2, 16
    width = 16
    modes1, modes2 = 4, 4

    key = jax.random.PRNGKey(0)
    k_x, k_p = jax.random.split(key)
    # input: (a(x,y), x, y) -> shape (B, S, S, 3)
    x = jax.random.normal(k_x, (B, S, S, 3), jnp.float32)
    params = init_params(k_p, modes1, modes2, width)
    prepped = prepare_params(params, modes1, modes2, width)

    fwd = jax.jit(functools.partial(fno2d_forward, modes1=modes1, modes2=modes2,
                                    width=width))
    out = jax.block_until_ready(fwd(x, prepped))
    assert out.shape == (B, S, S, 1), out.shape

    # correctness check against a pure-JAX reference of the torch math
    ref = jax.block_until_ready(fno2d_reference(x, params, modes1, modes2, width))
    err = float(jnp.max(jnp.abs(out - ref)))
    assert jnp.allclose(out, ref, rtol=1e-4, atol=1e-4), err

    print("KERNEL_OK")
</pallas_src>

<mosaic_0001>
module attributes {stable_mosaic.version = 11 : i64} {
  func.func @_linear_kernel(%arg0: i32, %arg1: memref<8x512xf32, #tpu.memory_space<vmem>>, %arg2: memref<16x8xf32, #tpu.memory_space<vmem>>, %arg3: memref<16x1xf32, #tpu.memory_space<vmem>>, %arg4: memref<16x512xf32, #tpu.memory_space<vmem>>) attributes {dimension_semantics = [#tpu.dimension_semantics<parallel>], iteration_bounds = array<i64: 1>, scalar_prefetch = 0 : i64, scratch_operands = 0 : i64, tpu.core_type = #tpu.core_type<tc>, window_params = [{transform_indices = @transform_0, window_bounds = array<i64: 8, 512>}, {pipeline_mode = #tpu.pipeline_mode<synchronous>, transform_indices = @transform_1, window_bounds = array<i64: 16, 8>}, {pipeline_mode = #tpu.pipeline_mode<synchronous>, transform_indices = @transform_2, window_bounds = array<i64: 16, 1>}, {transform_indices = @transform_3, window_bounds = array<i64: 16, 512>}]} {
    %c0 = arith.constant 0 : index
    %c0_0 = arith.constant 0 : index
    %0 = vector.load %arg2[%c0, %c0_0] : memref<16x8xf32, #tpu.memory_space<vmem>>, vector<16x8xf32>
    %c0_1 = arith.constant 0 : index
    %c0_2 = arith.constant 0 : index
    %1 = vector.load %arg1[%c0_1, %c0_2] : memref<8x512xf32, #tpu.memory_space<vmem>>, vector<8x512xf32>
    %cst = arith.constant dense<0.000000e+00> : vector<16x512xf32>
    %2 = tpu.matmul %0, %1, %cst {dimension_numbers = #tpu.dot_dimension_numbers<[1], [0], [0], [1], [0, 0, 1, 1], [], []>} : vector<16x8xf32>, vector<8x512xf32>, vector<16x512xf32> -> vector<16x512xf32>
    %c0_3 = arith.constant 0 : index
    %c0_4 = arith.constant 0 : index
    %3 = vector.load %arg3[%c0_3, %c0_4] : memref<16x1xf32, #tpu.memory_space<vmem>>, vector<16x1xf32>
    %4 = vector.broadcast %3 : vector<16x1xf32> to vector<16x512xf32>
    %5 = arith.addf %2, %4 : vector<16x512xf32>
    %c0_5 = arith.constant 0 : index
    %c0_6 = arith.constant 0 : index
    %6 = vector.load %arg4[%c0_5, %c0_6] : memref<16x512xf32, #tpu.memory_space<vmem>>, vector<16x512xf32>
    tpu.vector_store %arg4[%c0_5, %c0_6], %5 {strides = array<i32>} : memref<16x512xf32, #tpu.memory_space<vmem>>, vector<16x512xf32>,
    return
  }
  func.func @transform_0(%arg0: i32) -> (i32, i32) {
    %c0_i32 = arith.constant 0 : i32
    %c0_i32_0 = arith.constant 0 : i32
    return %c0_i32, %arg0 : i32, i32
  }
  func.func @transform_1(%arg0: i32) -> (i32, i32) {
    %c0_i32 = arith.constant 0 : i32
    %c0_i32_0 = arith.constant 0 : i32
    %c0_i32_1 = arith.constant 0 : i32
    return %c0_i32, %c0_i32_0 : i32, i32
  }
  func.func @transform_2(%arg0: i32) -> (i32, i32) {
    %c0_i32 = arith.constant 0 : i32
    %c0_i32_0 = arith.constant 0 : i32
    %c0_i32_1 = arith.constant 0 : i32
    return %c0_i32, %c0_i32_0 : i32, i32
  }
  func.func @transform_3(%arg0: i32) -> (i32, i32) {
    %c0_i32 = arith.constant 0 : i32
    %c0_i32_0 = arith.constant 0 : i32
    return %c0_i32, %arg0 : i32, i32
  }
}

module attributes {stable_mosaic.version = 11 : i64} {
  func.func @_spectral_mul_kernel(%arg0: memref<32x2x32xf32, #tpu.memory_space<vmem>>, %arg1: memref<32x32x32xf32, #tpu.memory_space<vmem>>, %arg2: memref<32x2x32xf32, #tpu.memory_space<vmem>>) attributes {dimension_semantics = [], scalar_prefetch = 0 : i64, scratch_operands = 0 : i64, tpu.core_type = #tpu.core_type<tc>} {
    %c0 = arith.constant 0 : index
    %c0_0 = arith.constant 0 : index
    %c0_1 = arith.constant 0 : index
    %0 = vector.load %arg0[%c0, %c0_0, %c0_1] : memref<32x2x32xf32, #tpu.memory_space<vmem>>, vector<32x2x32xf32>
    %c0_2 = arith.constant 0 : index
    %c0_3 = arith.constant 0 : index
    %c0_4 = arith.constant 0 : index
    %1 = vector.load %arg1[%c0_2, %c0_3, %c0_4] : memref<32x32x32xf32, #tpu.memory_space<vmem>>, vector<32x32x32xf32>
    "tpu.trace_start"() <{level = 10 : i32, message = "mbk,mkn->mbn"}> : () -> ()
    %cst = arith.constant dense<0.000000e+00> : vector<32x2x32xf32>
    %2 = tpu.matmul %0, %1, %cst {dimension_numbers = #tpu.dot_dimension_numbers<[2], [1], [1], [2], [0, 0, 0, 1, 1, 2], [0], [0]>} : vector<32x2x32xf32>, vector<32x32x32xf32>, vector<32x2x32xf32> -> vector<32x2x32xf32>
    "tpu.trace_stop"() : () -> ()
    %c0_5 = arith.constant 0 : index
    %c0_6 = arith.constant 0 : index
    %c0_7 = arith.constant 0 : index
    %3 = vector.load %arg2[%c0_5, %c0_6, %c0_7] : memref<32x2x32xf32, #tpu.memory_space<vmem>>, vector<32x2x32xf32>
    tpu.vector_store %arg2[%c0_5, %c0_6, %c0_7], %2 {strides = array<i32>} : memref<32x2x32xf32, #tpu.memory_space<vmem>>, vector<32x2x32xf32>,
    return
  }
}

module attributes {stable_mosaic.version = 11 : i64} {
  func.func @_mix_kernel(%arg0: i32, %arg1: memref<16x512xf32, #tpu.memory_space<vmem>>, %arg2: memref<16x512xf32, #tpu.memory_space<vmem>>, %arg3: memref<16x16xf32, #tpu.memory_space<vmem>>, %arg4: memref<16x1xf32, #tpu.memory_space<vmem>>, %arg5: memref<16x512xf32, #tpu.memory_space<vmem>>) attributes {dimension_semantics = [#tpu.dimension_semantics<parallel>], iteration_bounds = array<i64: 1>, scalar_prefetch = 0 : i64, scratch_operands = 0 : i64, tpu.core_type = #tpu.core_type<tc>, window_params = [{transform_indices = @transform_0, window_bounds = array<i64: 16, 512>}, {transform_indices = @transform_1, window_bounds = array<i64: 16, 512>}, {pipeline_mode = #tpu.pipeline_mode<synchronous>, transform_indices = @transform_2, window_bounds = array<i64: 16, 16>}, {pipeline_mode = #tpu.pipeline_mode<synchronous>, transform_indices = @transform_3, window_bounds = array<i64: 16, 1>}, {transform_indices = @transform_4, window_bounds = array<i64: 16, 512>}]} {
    %c0 = arith.constant 0 : index
    %c0_0 = arith.constant 0 : index
    %0 = vector.load %arg3[%c0, %c0_0] : memref<16x16xf32, #tpu.memory_space<vmem>>, vector<16x16xf32>
    %c0_1 = arith.constant 0 : index
    %c0_2 = arith.constant 0 : index
    %1 = vector.load %arg1[%c0_1, %c0_2] : memref<16x512xf32, #tpu.memory_space<vmem>>, vector<16x512xf32>
    %cst = arith.constant dense<0.000000e+00> : vector<16x512xf32>
    %2 = tpu.matmul %0, %1, %cst {dimension_numbers = #tpu.dot_dimension_numbers<[1], [0], [0], [1], [0, 0, 1, 1], [], []>} : vector<16x16xf32>, vector<16x512xf32>, vector<16x512xf32> -> vector<16x512xf32>
    %c0_3 = arith.constant 0 : index
    %c0_4 = arith.constant 0 : index
    %3 = vector.load %arg4[%c0_3, %c0_4] : memref<16x1xf32, #tpu.memory_space<vmem>>, vector<16x1xf32>
    %4 = vector.broadcast %3 : vector<16x1xf32> to vector<16x512xf32>
    %5 = arith.addf %2, %4 : vector<16x512xf32>
    %c0_5 = arith.constant 0 : index
    %c0_6 = arith.constant 0 : index
    %6 = vector.load %arg2[%c0_5, %c0_6] : memref<16x512xf32, #tpu.memory_space<vmem>>, vector<16x512xf32>
    %7 = arith.addf %5, %6 : vector<16x512xf32>
    %cst_7 = arith.constant 0.000000e+00 : f32
    %8 = vector.broadcast %cst_7 : f32 to vector<16x512xf32>
    %9 = arith.maximumf %7, %8 : vector<16x512xf32>
    %c0_8 = arith.constant 0 : index
    %c0_9 = arith.constant 0 : index
    %10 = vector.load %arg5[%c0_8, %c0_9] : memref<16x512xf32, #tpu.memory_space<vmem>>, vector<16x512xf32>
    tpu.vector_store %arg5[%c0_8, %c0_9], %9 {strides = array<i32>} : memref<16x512xf32, #tpu.memory_space<vmem>>, vector<16x512xf32>,
    return
  }
  func.func @transform_0(%arg0: i32) -> (i32, i32) {
    %c0_i32 = arith.constant 0 : i32
    %c0_i32_0 = arith.constant 0 : i32
    return %c0_i32, %arg0 : i32, i32
  }
  func.func @transform_1(%arg0: i32) -> (i32, i32) {
    %c0_i32 = arith.constant 0 : i32
    %c0_i32_0 = arith.constant 0 : i32
    return %c0_i32, %arg0 : i32, i32
  }
  func.func @transform_2(%arg0: i32) -> (i32, i32) {
    %c0_i32 = arith.constant 0 : i32
    %c0_i32_0 = arith.constant 0 : i32
    %c0_i32_1 = arith.constant 0 : i32
    return %c0_i32, %c0_i32_0 : i32, i32
  }
  func.func @transform_3(%arg0: i32) -> (i32, i32) {
    %c0_i32 = arith.constant 0 : i32
    %c0_i32_0 = arith.constant 0 : i32
    %c0_i32_1 = arith.constant 0 : i32
    return %c0_i32, %c0_i32_0 : i32, i32
  }
  func.func @transform_4(%arg0: i32) -> (i32, i32) {
    %c0_i32 = arith.constant 0 : i32
    %c0_i32_0 = arith.constant 0 : i32
    return %c0_i32, %arg0 : i32, i32
  }
}

module attributes {stable_mosaic.version = 11 : i64} {
  func.func @_tail_kernel(%arg0: i32, %arg1: memref<16x512xf32, #tpu.memory_space<vmem>>, %arg2: memref<16x512xf32, #tpu.memory_space<vmem>>, %arg3: memref<16x16xf32, #tpu.memory_space<vmem>>, %arg4: memref<16x1xf32, #tpu.memory_space<vmem>>, %arg5: memref<128x16xf32, #tpu.memory_space<vmem>>, %arg6: memref<128x1xf32, #tpu.memory_space<vmem>>, %arg7: memref<1x128xf32, #tpu.memory_space<vmem>>, %arg8: memref<1x1xf32, #tpu.memory_space<vmem>>, %arg9: memref<1x512xf32, #tpu.memory_space<vmem>>) attributes {dimension_semantics = [#tpu.dimension_semantics<parallel>], iteration_bounds = array<i64: 1>, scalar_prefetch = 0 : i64, scratch_operands = 0 : i64, tpu.core_type = #tpu.core_type<tc>, window_params = [{transform_indices = @transform_0, window_bounds = array<i64: 16, 512>}, {transform_indices = @transform_1, window_bounds = array<i64: 16, 512>}, {pipeline_mode = #tpu.pipeline_mode<synchronous>, transform_indices = @transform_2, window_bounds = array<i64: 16, 16>}, {pipeline_mode = #tpu.pipeline_mode<synchronous>, transform_indices = @transform_3, window_bounds = array<i64: 16, 1>}, {pipeline_mode = #tpu.pipeline_mode<synchronous>, transform_indices = @transform_4, window_bounds = array<i64: 128, 16>}, {pipeline_mode = #tpu.pipeline_mode<synchronous>, transform_indices = @transform_5, window_bounds = array<i64: 128, 1>}, {pipeline_mode = #tpu.pipeline_mode<synchronous>, transform_indices = @transform_6, window_bounds = array<i64: 1, 128>}, {pipeline_mode = #tpu.pipeline_mode<synchronous>, transform_indices = @transform_7, window_bounds = array<i64: 1, 1>}, {transform_indices = @transform_8, window_bounds = array<i64: 1, 512>}]} {
    %c0 = arith.constant 0 : index
    %c0_0 = arith.constant 0 : index
    %0 = vector.load %arg3[%c0, %c0_0] : memref<16x16xf32, #tpu.memory_space<vmem>>, vector<16x16xf32>
    %c0_1 = arith.constant 0 : index
    %c0_2 = arith.constant 0 : index
    %1 = vector.load %arg1[%c0_1, %c0_2] : memref<16x512xf32, #tpu.memory_space<vmem>>, vector<16x512xf32>
    %cst = arith.constant dense<0.000000e+00> : vector<16x512xf32>
    %2 = tpu.matmul %0, %1, %cst {dimension_numbers = #tpu.dot_dimension_numbers<[1], [0], [0], [1], [0, 0, 1, 1], [], []>} : vector<16x16xf32>, vector<16x512xf32>, vector<16x512xf32> -> vector<16x512xf32>
    %c0_3 = arith.constant 0 : index
    %c0_4 = arith.constant 0 : index
    %3 = vector.load %arg4[%c0_3, %c0_4] : memref<16x1xf32, #tpu.memory_space<vmem>>, vector<16x1xf32>
    %4 = vector.broadcast %3 : vector<16x1xf32> to vector<16x512xf32>
    %5 = arith.addf %2, %4 : vector<16x512xf32>
    %c0_5 = arith.constant 0 : index
    %c0_6 = arith.constant 0 : index
    %6 = vector.load %arg2[%c0_5, %c0_6] : memref<16x512xf32, #tpu.memory_space<vmem>>, vector<16x512xf32>
    %7 = arith.addf %5, %6 : vector<16x512xf32>
    %c0_7 = arith.constant 0 : index
    %c0_8 = arith.constant 0 : index
    %8 = vector.load %arg5[%c0_7, %c0_8] : memref<128x16xf32, #tpu.memory_space<vmem>>, vector<128x16xf32>
    %cst_9 = arith.constant dense<0.000000e+00> : vector<128x512xf32>
    %9 = tpu.matmul %8, %7, %cst_9 {dimension_numbers = #tpu.dot_dimension_numbers<[1], [0], [0], [1], [0, 0, 1, 1], [], []>} : vector<128x16xf32>, vector<16x512xf32>, vector<128x512xf32> -> vector<128x512xf32>
    %c0_10 = arith.constant 0 : index
    %c0_11 = arith.constant 0 : index
    %10 = vector.load %arg6[%c0_10, %c0_11] : memref<128x1xf32, #tpu.memory_space<vmem>>, vector<128x1xf32>
    %11 = vector.broadcast %10 : vector<128x1xf32> to vector<128x512xf32>
    %12 = arith.addf %9, %11 : vector<128x512xf32>
    %cst_12 = arith.constant 0.000000e+00 : f32
    %13 = vector.broadcast %cst_12 : f32 to vector<128x512xf32>
    %14 = arith.maximumf %12, %13 : vector<128x512xf32>
    %c0_13 = arith.constant 0 : index
    %c0_14 = arith.constant 0 : index
    %15 = vector.load %arg7[%c0_13, %c0_14] : memref<1x128xf32, #tpu.memory_space<vmem>>, vector<1x128xf32>
    %cst_15 = arith.constant dense<0.000000e+00> : vector<1x512xf32>
    %16 = tpu.matmul %15, %14, %cst_15 {dimension_numbers = #tpu.dot_dimension_numbers<[1], [0], [0], [1], [0, 0, 1, 1], [], []>} : vector<1x128xf32>, vector<128x512xf32>, vector<1x512xf32> -> vector<1x512xf32>
    %c0_16 = arith.constant 0 : index
    %c0_17 = arith.constant 0 : index
    %17 = vector.load %arg8[%c0_16, %c0_17] : memref<1x1xf32, #tpu.memory_space<vmem>>, vector<1x1xf32>
    %18 = vector.broadcast %17 : vector<1x1xf32> to vector<1x512xf32>
    %19 = arith.addf %16, %18 : vector<1x512xf32>
    %c0_18 = arith.constant 0 : index
    %c0_19 = arith.constant 0 : index
    %20 = vector.load %arg9[%c0_18, %c0_19] : memref<1x512xf32, #tpu.memory_space<vmem>>, vector<1x512xf32>
    tpu.vector_store %arg9[%c0_18, %c0_19], %19 {strides = array<i32>} : memref<1x512xf32, #tpu.memory_space<vmem>>, vector<1x512xf32>,
    return
  }
  func.func @transform_0(%arg0: i32) -> (i32, i32) {
    %c0_i32 = arith.constant 0 : i32
    %c0_i32_0 = arith.constant 0 : i32
    return %c0_i32, %arg0 : i32, i32
  }
  func.func @transform_1(%arg0: i32) -> (i32, i32) {
    %c0_i32 = arith.constant 0 : i32
    %c0_i32_0 = arith.constant 0 : i32
    return %c0_i32, %arg0 : i32, i32
  }
  func.func @transform_2(%arg0: i32) -> (i32, i32) {
    %c0_i32 = arith.constant 0 : i32
    %c0_i32_0 = arith.constant 0 : i32
    %c0_i32_1 = arith.constant 0 : i32
    return %c0_i32, %c0_i32_0 : i32, i32
  }
  func.func @transform_3(%arg0: i32) -> (i32, i32) {
    %c0_i32 = arith.constant 0 : i32
    %c0_i32_0 = arith.constant 0 : i32
    %c0_i32_1 = arith.constant 0 : i32
    return %c0_i32, %c0_i32_0 : i32, i32
  }
  func.func @transform_4(%arg0: i32) -> (i32, i32) {
    %c0_i32 = arith.constant 0 : i32
    %c0_i32_0 = arith.constant 0 : i32
    %c0_i32_1 = arith.constant 0 : i32
    return %c0_i32, %c0_i32_0 : i32, i32
  }
  func.func @transform_5(%arg0: i32) -> (i32, i32) {
    %c0_i32 = arith.constant 0 : i32
    %c0_i32_0 = arith.constant 0 : i32
    %c0_i32_1 = arith.constant 0 : i32
    return %c0_i32, %c0_i32_0 : i32, i32
  }
  func.func @transform_6(%arg0: i32) -> (i32, i32) {
    %c0_i32 = arith.constant 0 : i32
    %c0_i32_0 = arith.constant 0 : i32
    %c0_i32_1 = arith.constant 0 : i32
    return %c0_i32, %c0_i32_0 : i32, i32
  }
  func.func @transform_7(%arg0: i32) -> (i32, i32) {
    %c0_i32 = arith.constant 0 : i32
    %c0_i32_0 = arith.constant 0 : i32
    %c0_i32_1 = arith.constant 0 : i32
    return %c0_i32, %c0_i32_0 : i32, i32
  }
  func.func @transform_8(%arg0: i32) -> (i32, i32) {
    %c0_i32 = arith.constant 0 : i32
    %c0_i32_0 = arith.constant 0 : i32
    return %c0_i32, %arg0 : i32, i32
  }
}

</mosaic_0001>

<llo_original>
// kernel: fno2d_forward.9
$region0: #{fno2d_forward.9}
  #allocation0 [shape = 'u32[]', space=smem, size = 0x4, offset = 0x4, fixed_abs, tag = 'smem constant byte address 0x4 - core index']
  #allocation1 [shape = 'u32[72,128]{1,0:T(1,128)}', space=vmem, size = 0x9000, scoped, tag = 'internal scratch']
  %s0 = inlined_call_operand.vmem [shape: f32[8,512], index: 0, kind: input, shape index: {}]
  %s1 = inlined_call_operand.vmem [shape: f32[16,8], index: 1, kind: input, shape index: {}]
  %s2 = inlined_call_operand.vmem [shape: f32[16,1], index: 2, kind: input, shape index: {}]
  %s3 = inlined_call_operand.vmem [shape: f32[16,512], index: 3, kind: output, shape index: {}]
  %s4 = sld [smem:[#allocation0]]
  $region22: #{fno2d_forward.9} parent=0
    _
  %s6 = ssub.s32 1, %s4
  %s7 = scalar_select 0, %s6, %s4
  // Predicated region
  $region2: #{fno2d_forward.9} parent=0 // pred_check
    _
  $region3: #{fno2d_forward.9} parent=0 // pred_check_branch
    %9 = sbr.rel (0) target = $region5
  $region4: #{fno2d_forward.9} parent=0 // pred_region
    _
  $region5: #{fno2d_forward.9} parent=0 // pred_fallthru
    _
  // Predicated region
  $region6: #{fno2d_forward.9} parent=0 // pred_check
    _
  $region7: #{fno2d_forward.9} parent=0 // pred_check_branch
    %11 = sbr.rel (0) target = $region9
  $region8: #{fno2d_forward.9} parent=0 // pred_region
    _
  $region9: #{fno2d_forward.9} parent=0 // pred_fallthru
    _
  // Predicated region
  $region10: #{fno2d_forward.9} parent=0 // pred_check
    _
  $region11: #{fno2d_forward.9} parent=0 // pred_check_branch
    %13 = sbr.rel (0) target = $region13
  $region12: #{fno2d_forward.9} parent=0 // pred_region
    _
  $region13: #{fno2d_forward.9} parent=0 // pred_fallthru
    _
  %v14 = vld [vmem:[%s1] sm:$0xff]
  %v15 = vld [vmem:[%s1 + $0x8] sm:$0xff]
  %v16 = vld [vmem:[%s0] sm:$0xff]
  %v17 = vld [vmem:[%s0 + $0x8] sm:$0xff]
  %v18 = vld [vmem:[%s0 + $0x10] sm:$0xff]
  %v19 = vld [vmem:[%s0 + $0x18] sm:$0xff]
  %v20 = vld [vmem:[%s2] sm:$0xff]
  %v21 = vld [vmem:[%s2 + $0x8] sm:$0xff]
  %23 = vset.pattern.permute.xlu0 0
  %24 = vperm.xlu0 %23, %v20
  %v25 = vpop.permute.xlu0 %24
  %28 = vset.pattern.permute.xlu0 0
  %29 = vperm.xlu0 %28, %v21
  %v30 = vpop.permute.xlu0 %29
  %vm32 = vcmask 64512
  %v34 = vsel %vm32, %v14, 0
  %v37 = vsel %vm32, %v15, 0
  %39 = vmatpush.msra.mxu0 0.0
  %40 = vmatpush.msra.mxu0 0.0
  %41 = vmatpush.msra.mxu0 0.0
  %42 = vmatpush.msra.mxu0 0.0
  %43 = vmatpush.msra.mxu0 0.0
  %44 = vmatpush.msra.mxu0 0.0
  %45 = vmatpush.msra.mxu0 0.0
  %46 = vmatpush.msra.mxu0 0.0
  %47 = vmatpush.msra.mxu0 0.0
  %48 = vmatpush.msra.mxu0 0.0
  %49 = vmatpush.msra.mxu0 0.0
  %50 = vmatpush.msra.mxu0 0.0
  %51 = vmatpush.msra.mxu0 0.0
  %52 = vmatpush.msra.mxu0 0.0
  %53 = vmatpush.msra.mxu0 0.0
  %54 = vmatpush.msra.mxu0 %v16
  %55 = vmatmul.f32.gmra.mxu0 %v34
  %v56 = vpop.f32.mrf.mxu0
  %v57 = vadd.f32 %v25, %v56
  %58 = vmatmul.f32.gmra.mxu0 %v37
  %v59 = vpop.f32.mrf.mxu0
  %v60 = vadd.f32 %v30, %v59
  %61 = vdwg.mxu0
  %62 = vmatpush.msra.mxu0 0.0
  %63 = vmatpush.msra.mxu0 0.0
  %64 = vmatpush.msra.mxu0 0.0
  %65 = vmatpush.msra.mxu0 0.0
  %66 = vmatpush.msra.mxu0 0.0
  %67 = vmatpush.msra.mxu0 0.0
  %68 = vmatpush.msra.mxu0 0.0
  %69 = vmatpush.msra.mxu0 0.0
  %70 = vmatpush.msra.mxu0 0.0
  %71 = vmatpush.msra.mxu0 0.0
  %72 = vmatpush.msra.mxu0 0.0
  %73 = vmatpush.msra.mxu0 0.0
  %74 = vmatpush.msra.mxu0 0.0
  %75 = vmatpush.msra.mxu0 0.0
  %76 = vmatpush.msra.mxu0 0.0
  %77 = vmatpush.msra.mxu0 %v17
  %78 = vmatmul.f32.gmra.mxu0 %v34
  %v79 = vpop.f32.mrf.mxu0
  %v80 = vadd.f32 %v25, %v79
  %81 = vmatmul.f32.gmra.mxu0 %v37
  %v82 = vpop.f32.mrf.mxu0
  %v83 = vadd.f32 %v30, %v82
  %84 = vdwg.mxu0
  %85 = vmatpush.msra.mxu0 0.0
  %86 = vmatpush.msra.mxu0 0.0
  %87 = vmatpush.msra.mxu0 0.0
  %88 = vmatpush.msra.mxu0 0.0
  %89 = vmatpush.msra.mxu0 0.0
  %90 = vmatpush.msra.mxu0 0.0
  %91 = vmatpush.msra.mxu0 0.0
  %92 = vmatpush.msra.mxu0 0.0
  %93 = vmatpush.msra.mxu0 0.0
  %94 = vmatpush.msra.mxu0 0.0
  %95 = vmatpush.msra.mxu0 0.0
  %96 = vmatpush.msra.mxu0 0.0
  %97 = vmatpush.msra.mxu0 0.0
  %98 = vmatpush.msra.mxu0 0.0
  %99 = vmatpush.msra.mxu0 0.0
  %100 = vmatpush.msra.mxu0 %v18
  %101 = vmatmul.f32.gmra.mxu0 %v34
  %v102 = vpop.f32.mrf.mxu0
  %v103 = vadd.f32 %v25, %v102
  %104 = vmatmul.f32.gmra.mxu0 %v37
  %v105 = vpop.f32.mrf.mxu0
  %v106 = vadd.f32 %v30, %v105
  %107 = vdwg.mxu0
  %108 = vmatpush.msra.mxu0 0.0
  %109 = vmatpush.msra.mxu0 0.0
  %110 = vmatpush.msra.mxu0 0.0
  %111 = vmatpush.msra.mxu0 0.0
  %112 = vmatpush.msra.mxu0 0.0
  %113 = vmatpush.msra.mxu0 0.0
  %114 = vmatpush.msra.mxu0 0.0
  %115 = vmatpush.msra.mxu0 0.0
  %116 = vmatpush.msra.mxu0 0.0
  %117 = vmatpush.msra.mxu0 0.0
  %118 = vmatpush.msra.mxu0 0.0
  %119 = vmatpush.msra.mxu0 0.0
  %120 = vmatpush.msra.mxu0 0.0
  %121 = vmatpush.msra.mxu0 0.0
  %122 = vmatpush.msra.mxu0 0.0
  %123 = vmatpush.msra.mxu0 %v19
  %124 = vmatmul.f32.gmra.mxu0 %v34
  %v125 = vpop.f32.mrf.mxu0
  %v126 = vadd.f32 %v25, %v125
  %127 = vmatmul.f32.gmra.mxu0 %v37
  %v128 = vpop.f32.mrf.mxu0
  %v129 = vadd.f32 %v30, %v128
  %130 = vdwg.mxu0
  %131 = vst [vmem:[%s3] sm:$0xff] %v57
  %132 = vst [vmem:[%s3 + $0x8] sm:$0xff] %v80
  %133 = vst [vmem:[%s3 + $0x10] sm:$0xff] %v103
  %134 = vst [vmem:[%s3 + $0x18] sm:$0xff] %v126
  %135 = vst [vmem:[%s3 + $0x20] sm:$0xff] %v60
  %136 = vst [vmem:[%s3 + $0x28] sm:$0xff] %v83
  %137 = vst [vmem:[%s3 + $0x30] sm:$0xff] %v106
  %138 = vst [vmem:[%s3 + $0x38] sm:$0xff] %v129
  // Predicated region
  $region14: #{fno2d_forward.9} parent=0 // pred_check
    _
  $region15: #{fno2d_forward.9} parent=0 // pred_check_branch
    %140 = sbr.rel (0) target = $region17
  $region16: #{fno2d_forward.9} parent=0 // pred_region
    _
  $region17: #{fno2d_forward.9} parent=0 // pred_fallthru
    _
  // Predicated region
  $region18: #{fno2d_forward.9} parent=0 // pred_check
    _
  $region19: #{fno2d_forward.9} parent=0 // pred_check_branch
    %142 = sbr.rel (0) target = $region21
  $region20: #{fno2d_forward.9} parent=0 // pred_region
    _
  $region21: #{fno2d_forward.9} parent=0 // pred_fallthru
    _

// kernel: fno2d_forward.10
$region0: #{fno2d_forward.10}
  #allocation0 [shape = 'u32[]', space=smem, size = 0x4, offset = 0x4, fixed_abs, tag = 'smem constant byte address 0x4 - core index']
  #allocation1 [shape = 'u32[72,128]{1,0:T(1,128)}', space=vmem, size = 0x9000, scoped, tag = 'internal scratch']
  %s0 = inlined_call_operand.vmem [shape: f32[32,2,32], index: 0, kind: input, shape index: {}]
  %s1 = inlined_call_operand.vmem [shape: f32[32,32,32], index: 1, kind: input, shape index: {}]
  %s2 = inlined_call_operand.vmem [shape: f32[32,2,32], index: 2, kind: output, shape index: {}]
  %s3 = sld [smem:[#allocation0]]
  $region18: #{fno2d_forward.10} parent=0
    _
  %s5 = ssub.s32 1, %s3
  %s6 = scalar_select 0, %s5, %s3
  // Predicated region
  $region2: #{fno2d_forward.10} parent=0 // pred_check
    _
  $region3: #{fno2d_forward.10} parent=0 // pred_check_branch
    %8 = sbr.rel (0) target = $region5
  $region4: #{fno2d_forward.10} parent=0 // pred_region
    _
  $region5: #{fno2d_forward.10} parent=0 // pred_fallthru
    _
  // Predicated region
  $region6: #{fno2d_forward.10} parent=0 // pred_check
    _
  $region7: #{fno2d_forward.10} parent=0 // pred_check_branch
    %10 = sbr.rel (0) target = $region9
  $region8: #{fno2d_forward.10} parent=0 // pred_region
    _
  $region9: #{fno2d_forward.10} parent=0 // pred_fallthru
    _
  %v11 = vld [vmem:[%s0] sm:$0x3]
  %v12 = vld [vmem:[%s0 + $0x2] sm:$0x3]
  %v13 = vld [vmem:[%s0 + $0x4] sm:$0x3]
  %v14 = vld [vmem:[%s0 + $0x6] sm:$0x3]
  %v15 = vld [vmem:[%s0 + $0x8] sm:$0x3]
  %v16 = vld [vmem:[%s0 + $0xa] sm:$0x3]
  %v17 = vld [vmem:[%s0 + $0xc] sm:$0x3]
  %v18 = vld [vmem:[%s0 + $0xe] sm:$0x3]
  %v19 = vld [vmem:[%s0 + $0x10] sm:$0x3]
  %v20 = vld [vmem:[%s0 + $0x12] sm:$0x3]
  %v21 = vld [vmem:[%s0 + $0x14] sm:$0x3]
  %v22 = vld [vmem:[%s0 + $0x16] sm:$0x3]
  %v23 = vld [vmem:[%s0 + $0x18] sm:$0x3]
  %v24 = vld [vmem:[%s0 + $0x1a] sm:$0x3]
  %v25 = vld [vmem:[%s0 + $0x1c] sm:$0x3]
  %v26 = vld [vmem:[%s0 + $0x1e] sm:$0x3]
  %v27 = vld [vmem:[%s0 + $0x20] sm:$0x3]
  %v28 = vld [vmem:[%s0 + $0x22] sm:$0x3]
  %v29 = vld [vmem:[%s0 + $0x24] sm:$0x3]
  %v30 = vld [vmem:[%s0 + $0x26] sm:$0x3]
  %v31 = vld [vmem:[%s0 + $0x28] sm:$0x3]
  %v32 = vld [vmem:[%s0 + $0x2a] sm:$0x3]
  %v33 = vld [vmem:[%s0 + $0x2c] sm:$0x3]
  %v34 = vld [vmem:[%s0 + $0x2e] sm:$0x3]
  %v35 = vld [vmem:[%s0 + $0x30] sm:$0x3]
  %v36 = vld [vmem:[%s0 + $0x32] sm:$0x3]
  %v37 = vld [vmem:[%s0 + $0x34] sm:$0x3]
  %v38 = vld [vmem:[%s0 + $0x36] sm:$0x3]
  %v39 = vld [vmem:[%s0 + $0x38] sm:$0x3]
  %v40 = vld [vmem:[%s0 + $0x3a] sm:$0x3]
  %v41 = vld [vmem:[%s0 + $0x3c] sm:$0x3]
  %v42 = vld [vmem:[%s0 + $0x3e] sm:$0x3]
  %v43 = vld [vmem:[%s1] sm:$0xff]
  %v44 = vld [vmem:[%s1 + $0x8] sm:$0xff]
  %v45 = vld [vmem:[%s1 + $0x10] sm:$0xff]
  %v46 = vld [vmem:[%s1 + $0x18] sm:$0xff]
  %v47 = vld [vmem:[%s1 + $0x20] sm:$0xff]
  %v48 = vld [vmem:[%s1 + $0x28] sm:$0xff]
  %v49 = vld [vmem:[%s1 + $0x30] sm:$0xff]
  %v50 = vld [vmem:[%s1 + $0x38] sm:$0xff]
  %v51 = vld [vmem:[%s1 + $0x40] sm:$0xff]
  %v52 = vld [vmem:[%s1 + $0x48] sm:$0xff]
  %v53 = vld [vmem:[%s1 + $0x50] sm:$0xff]
  %v54 = vld [vmem:[%s1 + $0x58] sm:$0xff]
  %v55 = vld [vmem:[%s1 + $0x60] sm:$0xff]
  %v56 = vld [vmem:[%s1 + $0x68] sm:$0xff]
  %v57 = vld [vmem:[%s1 + $0x70] sm:$0xff]
  %v58 = vld [vmem:[%s1 + $0x78] sm:$0xff]
  %v59 = vld [vmem:[%s1 + $0x80] sm:$0xff]
  %v60 = vld [vmem:[%s1 + $0x88] sm:$0xff]
  %v61 = vld [vmem:[%s1 + $0x90] sm:$0xff]
  %v62 = vld [vmem:[%s1 + $0x98] sm:$0xff]
  %v63 = vld [vmem:[%s1 + $0xa0] sm:$0xff]
  %v64 = vld [vmem:[%s1 + $0xa8] sm:$0xff]
  %v65 = vld [vmem:[%s1 + $0xb0] sm:$0xff]
  %v66 = vld [vmem:[%s1 + $0xb8] sm:$0xff]
  %v67 = vld [vmem:[%s1 + $0xc0] sm:$0xff]
  %v68 = vld [vmem:[%s1 + $0xc8] sm:$0xff]
  %v69 = vld [vmem:[%s1 + $0xd0] sm:$0xff]
  %v70 = vld [vmem:[%s1 + $0xd8] sm:$0xff]
  %v71 = vld [vmem:[%s1 + $0xe0] sm:$0xff]
  %v72 = vld [vmem:[%s1 + $0xe8] sm:$0xff]
  %v73 = vld [vmem:[%s1 + $0xf0] sm:$0xff]
  %v74 = vld [vmem:[%s1 + $0xf8] sm:$0xff]
  %v75 = vld [vmem:[%s1 + $0x100] sm:$0xff]
  %v76 = vld [vmem:[%s1 + $0x108] sm:$0xff]
  %v77 = vld [vmem:[%s1 + $0x110] sm:$0xff]
  %v78 = vld [vmem:[%s1 + $0x118] sm:$0xff]
  %v79 = vld [vmem:[%s1 + $0x120] sm:$0xff]
  %v80 = vld [vmem:[%s1 + $0x128] sm:$0xff]
  %v81 = vld [vmem:[%s1 + $0x130] sm:$0xff]
  %v82 = vld [vmem:[%s1 + $0x138] sm:$0xff]
  %v83 = vld [vmem:[%s1 + $0x140] sm:$0xff]
  %v84 = vld [vmem:[%s1 + $0x148] sm:$0xff]
  %v85 = vld [vmem:[%s1 + $0x150] sm:$0xff]
  %v86 = vld [vmem:[%s1 + $0x158] sm:$0xff]
  %v87 = vld [vmem:[%s1 + $0x160] sm:$0xff]
  %v88 = vld [vmem:[%s1 + $0x168] sm:$0xff]
  %v89 = vld [vmem:[%s1 + $0x170] sm:$0xff]
  %v90 = vld [vmem:[%s1 + $0x178] sm:$0xff]
  %v91 = vld [vmem:[%s1 + $0x180] sm:$0xff]
  %v92 = vld [vmem:[%s1 + $0x188] sm:$0xff]
  %v93 = vld [vmem:[%s1 + $0x190] sm:$0xff]
  %v94 = vld [vmem:[%s1 + $0x198] sm:$0xff]
  %v95 = vld [vmem:[%s1 + $0x1a0] sm:$0xff]
  %v96 = vld [vmem:[%s1 + $0x1a8] sm:$0xff]
  %v97 = vld [vmem:[%s1 + $0x1b0] sm:$0xff]
  %v98 = vld [vmem:[%s1 + $0x1b8] sm:$0xff]
  %v99 = vld [vmem:[%s1 + $0x1c0] sm:$0xff]
  %v100 = vld [vmem:[%s1 + $0x1c8] sm:$0xff]
  %v101 = vld [vmem:[%s1 + $0x1d0] sm:$0xff]
  %v102 = vld [vmem:[%s1 + $0x1d8] sm:$0xff]
  %v103 = vld [vmem:[%s1 + $0x1e0] sm:$0xff]
  %v104 = vld [vmem:[%s1 + $0x1e8] sm:$0xff]
  %v105 = vld [vmem:[%s1 + $0x1f0] sm:$0xff]
  %v106 = vld [vmem:[%s1 + $0x1f8] sm:$0xff]
  %v107 = vld [vmem:[%s1 + $0x200] sm:$0xff]
  %v108 = vld [vmem:[%s1 + $0x208] sm:$0xff]
  %v109 = vld [vmem:[%s1 + $0x210] sm:$0xff]
  %v110 = vld [vmem:[%s1 + $0x218] sm:$0xff]
  %v111 = vld [vmem:[%s1 + $0x220] sm:$0xff]
  %v112 = vld [vmem:[%s1 + $0x228] sm:$0xff]
  %v113 = vld [vmem:[%s1 + $0x230] sm:$0xff]
  %v114 = vld [vmem:[%s1 + $0x238] sm:$0xff]
  %v115 = vld [vmem:[%s1 + $0x240] sm:$0xff]
  %v116 = vld [vmem:[%s1 + $0x248] sm:$0xff]
  %v117 = vld [vmem:[%s1 + $0x250] sm:$0xff]
  %v118 = vld [vmem:[%s1 + $0x258] sm:$0xff]
  %v119 = vld [vmem:[%s1 + $0x260] sm:$0xff]
  %v120 = vld [vmem:[%s1 + $0x268] sm:$0xff]
  %v121 = vld [vmem:[%s1 + $0x270] sm:$0xff]
  %v122 = vld [vmem:[%s1 + $0x278] sm:$0xff]
  %v123 = vld [vmem:[%s1 + $0x280] sm:$0xff]
  %v124 = vld [vmem:[%s1 + $0x288] sm:$0xff]
  %v125 = vld [vmem:[%s1 + $0x290] sm:$0xff]
  %v126 = vld [vmem:[%s1 + $0x298] sm:$0xff]
  %v127 = vld [vmem:[%s1 + $0x2a0] sm:$0xff]
  %v128 = vld [vmem:[%s1 + $0x2a8] sm:$0xff]
  %v129 = vld [vmem:[%s1 + $0x2b0] sm:$0xff]
  %v130 = vld [vmem:[%s1 + $0x2b8] sm:$0xff]
  %v131 = vld [vmem:[%s1 + $0x2c0] sm:$0xff]
  %v132 = vld [vmem:[%s1 + $0x2c8] sm:$0xff]
  %v133 = vld [vmem:[%s1 + $0x2d0] sm:$0xff]
  %v134 = vld [vmem:[%s1 + $0x2d8] sm:$0xff]
  %v135 = vld [vmem:[%s1 + $0x2e0] sm:$0xff]
  %v136 = vld [vmem:[%s1 + $0x2e8] sm:$0xff]
  %v137 = vld [vmem:[%s1 + $0x2f0] sm:$0xff]
  %v138 = vld [vmem:[%s1 + $0x2f8] sm:$0xff]
  %v139 = vld [vmem:[%s1 + $0x300] sm:$0xff]
  %v140 = vld [vmem:[%s1 + $0x308] sm:$0xff]
  %v141 = vld [vmem:[%s1 + $0x310] sm:$0xff]
  %v142 = vld [vmem:[%s1 + $0x318] sm:$0xff]
  %v143 = vld [vmem:[%s1 + $0x320] sm:$0xff]
  %v144 = vld [vmem:[%s1 + $0x328] sm:$0xff]
  %v145 = vld [vmem:[%s1 + $0x330] sm:$0xff]
  %v146 = vld [vmem:[%s1 + $0x338] sm:$0xff]
  %v147 = vld [vmem:[%s1 + $0x340] sm:$0xff]
  %v148 = vld [vmem:[%s1 + $0x348] sm:$0xff]
  %v149 = vld [vmem:[%s1 + $0x350] sm:$0xff]
  %v150 = vld [vmem:[%s1 + $0x358] sm:$0xff]
  %v151 = vld [vmem:[%s1 + $0x360] sm:$0xff]
  %v152 = vld [vmem:[%s1 + $0x368] sm:$0xff]
  %v153 = vld [vmem:[%s1 + $0x370] sm:$0xff]
  %v154 = vld [vmem:[%s1 + $0x378] sm:$0xff]
  %v155 = vld [vmem:[%s1 + $0x380] sm:$0xff]
  %v156 = vld [vmem:[%s1 + $0x388] sm:$0xff]
  %v157 = vld [vmem:[%s1 + $0x390] sm:$0xff]
  %v158 = vld [vmem:[%s1 + $0x398] sm:$0xff]
  %v159 = vld [vmem:[%s1 + $0x3a0] sm:$0xff]
  %v160 = vld [vmem:[%s1 + $0x3a8] sm:$0xff]
  %v161 = vld [vmem:[%s1 + $0x3b0] sm:$0xff]
  %v162 = vld [vmem:[%s1 + $0x3b8] sm:$0xff]
  %v163 = vld [vmem:[%s1 + $0x3c0] sm:$0xff]
  %v164 = vld [vmem:[%s1 + $0x3c8] sm:$0xff]
  %v165 = vld [vmem:[%s1 + $0x3d0] sm:$0xff]
  %v166 = vld [vmem:[%s1 + $0x3d8] sm:$0xff]
  %v167 = vld [vmem:[%s1 + $0x3e0] sm:$0xff]
  %v168 = vld [vmem:[%s1 + $0x3e8] sm:$0xff]
  %v169 = vld [vmem:[%s1 + $0x3f0] sm:$0xff]
  %v170 = vld [vmem:[%s1 + $0x3f8] sm:$0xff]
  %vm171 = vcmask 261120
  %v173 = vsel %vm171, %v11, 0
  %175 = vmatpush.msra.mxu0 0.0
  %176 = vmatpush.msra.mxu0 0.0
  %177 = vmatpush.msra.mxu0 0.0
  %178 = vmatpush.msra.mxu0 0.0
  %179 = vmatpush.msra.mxu0 0.0
  %180 = vmatpush.msra.mxu0 0.0
  %181 = vmatpush.msra.mxu0 0.0
  %182 = vmatpush.msra.mxu0 0.0
  %183 = vmatpush.msra.mxu0 0.0
  %184 = vmatpush.msra.mxu0 0.0
  %185 = vmatpush.msra.mxu0 0.0
  %186 = vmatpush.msra.mxu0 0.0
  %187 = vmatpush.msra.mxu0 %v46
  %188 = vmatpush.msra.mxu0 %v45
  %189 = vmatpush.msra.mxu0 %v44
  %190 = vmatpush.msra.mxu0 %v43
  %191 = vmatmul.f32.gmra.mxu0 %v173
  %v192 = vpop.f32.mrf.mxu0
  %v193 = vadd.f32 0.0, %v192
  %194 = vdwg.mxu0
  %v196 = vsel %vm171, %v12, 0
  %198 = vmatpush.msra.mxu0 0.0
  %199 = vmatpush.msra.mxu0 0.0
  %200 = vmatpush.msra.mxu0 0.0
  %201 = vmatpush.msra.mxu0 0.0
  %202 = vmatpush.msra.mxu0 0.0
  %203 = vmatpush.msra.mxu0 0.0
  %204 = vmatpush.msra.mxu0 0.0
  %205 = vmatpush.msra.mxu0 0.0
  %206 = vmatpush.msra.mxu0 0.0
  %207 = vmatpush.msra.mxu0 0.0
  %208 = vmatpush.msra.mxu0 0.0
  %209 = vmatpush.msra.mxu0 0.0
  %210 = vmatpush.msra.mxu0 %v50
  %211 = vmatpush.msra.mxu0 %v49
  %212 = vmatpush.msra.mxu0 %v48
  %213 = vmatpush.msra.mxu0 %v47
  %214 = vmatmul.f32.gmra.mxu0 %v196
  %v215 = vpop.f32.mrf.mxu0
  %v216 = vadd.f32 0.0, %v215
  %217 = vdwg.mxu0
  %v219 = vsel %vm171, %v13, 0
  %221 = vmatpush.msra.mxu0 0.0
  %222 = vmatpush.msra.mxu0 0.0
  %223 = vmatpush.msra.mxu0 0.0
  %224 = vmatpush.msra.mxu0 0.0
  %225 = vmatpush.msra.mxu0 0.0
  %226 = vmatpush.msra.mxu0 0.0
  %227 = vmatpush.msra.mxu0 0.0
  %228 = vmatpush.msra.mxu0 0.0
  %229 = vmatpush.msra.mxu0 0.0
  %230 = vmatpush.msra.mxu0 0.0
  %231 = vmatpush.msra.mxu0 0.0
  %232 = vmatpush.msra.mxu0 0.0
  %233 = vmatpush.msra.mxu0 %v54
  %234 = vmatpush.msra.mxu0 %v53
  %235 = vmatpush.msra.mxu0 %v52
  %236 = vmatpush.msra.mxu0 %v51
  %237 = vmatmul.f32.gmra.mxu0 %v219
  %v238 = vpop.f32.mrf.mxu0
  %v239 = vadd.f32 0.0, %v238
  %240 = vdwg.mxu0
  %v242 = vsel %vm171, %v14, 0
  %244 = vmatpush.msra.mxu0 0.0
  %245 = vmatpush.msra.mxu0 0.0
  %246 = vmatpush.msra.mxu0 0.0
  %247 = vmatpush.msra.mxu0 0.0
  %248 = vmatpush.msra.mxu0 0.0
  %249 = vmatpush.msra.mxu0 0.0
  %250 = vmatpush.msra.mxu0 0.0
  %251 = vmatpush.msra.mxu0 0.0
  %252 = vmatpush.msra.mxu0 0.0
  %253 = vmatpush.msra.mxu0 0.0
  %254 = vmatpush.msra.mxu0 0.0
  %255 = vmatpush.msra.mxu0 0.0
  %256 = vmatpush.msra.mxu0 %v58
  %257 = vmatpush.msra.mxu0 %v57
  %258 = vmatpush.msra.mxu0 %v56
  %259 = vmatpush.msra.mxu0 %v55
  %260 = vmatmul.f32.gmra.mxu0 %v242
  %v261 = vpop.f32.mrf.mxu0
  %v262 = vadd.f32 0.0, %v261
  %263 = vdwg.mxu0
  %v265 = vsel %vm171, %v15, 0
  %267 = vmatpush.msra.mxu0 0.0
  %268 = vmatpush.msra.mxu0 0.0
  %269 = vmatpush.msra.mxu0 0.0
  %270 = vmatpush.msra.mxu0 0.0
  %271 = vmatpush.msra.mxu0 0.0
  %272 = vmatpush.msra.mxu0 0.0
  %273 = vmatpush.msra.mxu0 0.0
  %274 = vmatpush.msra.mxu0 0.0
  %275 = vmatpush.msra.mxu0 0.0
  %276 = vmatpush.msra.mxu0 0.0
  %277 = vmatpush.msra.mxu0 0.0
  %278 = vmatpush.msra.mxu0 0.0
  %279 = vmatpush.msra.mxu0 %v62
  %280 = vmatpush.msra.mxu0 %v61
  %281 = vmatpush.msra.mxu0 %v60
  %282 = vmatpush.msra.mxu0 %v59
  %283 = vmatmul.f32.gmra.mxu0 %v265
  %v284 = vpop.f32.mrf.mxu0
  %v285 = vadd.f32 0.0, %v284
  %286 = vdwg.mxu0
  %v288 = vsel %vm171, %v16, 0
  %290 = vmatpush.msra.mxu0 0.0
  %291 = vmatpush.msra.mxu0 0.0
  %292 = vmatpush.msra.mxu0 0.0
  %293 = vmatpush.msra.mxu0 0.0
  %294 = vmatpush.msra.mxu0 0.0
  %295 = vmatpush.msra.mxu0 0.0
  %296 = vmatpush.msra.mxu0 0.0
  %297 = vmatpush.msra.mxu0 0.0
  %298 = vmatpush.msra.mxu0 0.0
  %299 = vmatpush.msra.mxu0 0.0
  %300 = vmatpush.msra.mxu0 0.0
  %301 = vmatpush.msra.mxu0 0.0
  %302 = vmatpush.msra.mxu0 %v66
  %303 = vmatpush.msra.mxu0 %v65
  %304 = vmatpush.msra.mxu0 %v64
  %305 = vmatpush.msra.mxu0 %v63
  %306 = vmatmul.f32.gmra.mxu0 %v288
  %v307 = vpop.f32.mrf.mxu0
  %v308 = vadd.f32 0.0, %v307
  %309 = vdwg.mxu0
  %v311 = vsel %vm171, %v17, 0
  %313 = vmatpush.msra.mxu0 0.0
  %314 = vmatpush.msra.mxu0 0.0
  %315 = vmatpush.msra.mxu0 0.0
  %316 = vmatpush.msra.mxu0 0.0
  %317 = vmatpush.msra.mxu0 0.0
  %318 = vmatpush.msra.mxu0 0.0
  %319 = vmatpush.msra.mxu0 0.0
  %320 = vmatpush.msra.mxu0 0.0
  %321 = vmatpush.msra.mxu0 0.0
  %322 = vmatpush.msra.mxu0 0.0
  %323 = vmatpush.msra.mxu0 0.0
  %324 = vmatpush.msra.mxu0 0.0
  %325 = vmatpush.msra.mxu0 %v70
  %326 = vmatpush.msra.mxu0 %v69
  %327 = vmatpush.msra.mxu0 %v68
  %328 = vmatpush.msra.mxu0 %v67
  %329 = vmatmul.f32.gmra.mxu0 %v311
  %v330 = vpop.f32.mrf.mxu0
  %v331 = vadd.f32 0.0, %v330
  %332 = vdwg.mxu0
  %v334 = vsel %vm171, %v18, 0
  %336 = vmatpush.msra.mxu0 0.0
  %337 = vmatpush.msra.mxu0 0.0
  %338 = vmatpush.msra.mxu0 0.0
  %339 = vmatpush.msra.mxu0 0.0
  %340 = vmatpush.msra.mxu0 0.0
  %341 = vmatpush.msra.mxu0 0.0
  %342 = vmatpush.msra.mxu0 0.0
  %343 = vmatpush.msra.mxu0 0.0
  %344 = vmatpush.msra.mxu0 0.0
  %345 = vmatpush.msra.mxu0 0.0
  %346 = vmatpush.msra.mxu0 0.0
  %347 = vmatpush.msra.mxu0 0.0
  %348 = vmatpush.msra.mxu0 %v74
  %349 = vmatpush.msra.mxu0 %v73
  %350 = vmatpush.msra.mxu0 %v72
  %351 = vmatpush.msra.mxu0 %v71
  %352 = vmatmul.f32.gmra.mxu0 %v334
  %v353 = vpop.f32.mrf.mxu0
  %v354 = vadd.f32 0.0, %v353
  %355 = vdwg.mxu0
  %v357 = vsel %vm171, %v19, 0
  %359 = vmatpush.msra.mxu0 0.0
  %360 = vmatpush.msra.mxu0 0.0
  %361 = vmatpush.msra.mxu0 0.0
  %362 = vmatpush.msra.mxu0 0.0
  %363 = vmatpush.msra.mxu0 0.0
  %364 = vmatpush.msra.mxu0 0.0
  %365 = vmatpush.msra.mxu0 0.0
  %366 = vmatpush.msra.mxu0 0.0
  %367 = vmatpush.msra.mxu0 0.0
  %368 = vmatpush.msra.mxu0 0.0
  %369 = vmatpush.msra.mxu0 0.0
  %370 = vmatpush.msra.mxu0 0.0
  %371 = vmatpush.msra.mxu0 %v78
  %372 = vmatpush.msra.mxu0 %v77
  %373 = vmatpush.msra.mxu0 %v76
  %374 = vmatpush.msra.mxu0 %v75
  %375 = vmatmul.f32.gmra.mxu0 %v357
  %v376 = vpop.f32.mrf.mxu0
  %v377 = vadd.f32 0.0, %v376
  %378 = vdwg.mxu0
  %v380 = vsel %vm171, %v20, 0
  %382 = vmatpush.msra.mxu0 0.0
  %383 = vmatpush.msra.mxu0 0.0
  %384 = vmatpush.msra.mxu0 0.0
  %385 = vmatpush.msra.mxu0 0.0
  %386 = vmatpush.msra.mxu0 0.0
  %387 = vmatpush.msra.mxu0 0.0
  %388 = vmatpush.msra.mxu0 0.0
  %389 = vmatpush.msra.mxu0 0.0
  %390 = vmatpush.msra.mxu0 0.0
  %391 = vmatpush.msra.mxu0 0.0
  %392 = vmatpush.msra.mxu0 0.0
  %393 = vmatpush.msra.mxu0 0.0
  %394 = vmatpush.msra.mxu0 %v82
  %395 = vmatpush.msra.mxu0 %v81
  %396 = vmatpush.msra.mxu0 %v80
  %397 = vmatpush.msra.mxu0 %v79
  %398 = vmatmul.f32.gmra.mxu0 %v380
  %v399 = vpop.f32.mrf.mxu0
  %v400 = vadd.f32 0.0, %v399
  %401 = vdwg.mxu0
  %v403 = vsel %vm171, %v21, 0
  %405 = vmatpush.msra.mxu0 0.0
  %406 = vmatpush.msra.mxu0 0.0
  %407 = vmatpush.msra.mxu0 0.0
  %408 = vmatpush.msra.mxu0 0.0
  %409 = vmatpush.msra.mxu0 0.0
  %410 = vmatpush.msra.mxu0 0.0
  %411 = vmatpush.msra.mxu0 0.0
  %412 = vmatpush.msra.mxu0 0.0
  %413 = vmatpush.msra.mxu0 0.0
  %414 = vmatpush.msra.mxu0 0.0
  %415 = vmatpush.msra.mxu0 0.0
  %416 = vmatpush.msra.mxu0 0.0
  %417 = vmatpush.msra.mxu0 %v86
  %418 = vmatpush.msra.mxu0 %v85
  %419 = vmatpush.msra.mxu0 %v84
  %420 = vmatpush.msra.mxu0 %v83
  %421 = vmatmul.f32.gmra.mxu0 %v403
  %v422 = vpop.f32.mrf.mxu0
  %v423 = vadd.f32 0.0, %v422
  %424 = vdwg.mxu0
  %v426 = vsel %vm171, %v22, 0
  %428 = vmatpush.msra.mxu0 0.0
  %429 = vmatpush.msra.mxu0 0.0
  %430 = vmatpush.msra.mxu0 0.0
  %431 = vmatpush.msra.mxu0 0.0
  %432 = vmatpush.msra.mxu0 0.0
  %433 = vmatpush.msra.mxu0 0.0
  %434 = vmatpush.msra.mxu0 0.0
  %435 = vmatpush.msra.mxu0 0.0
  %436 = vmatpush.msra.mxu0 0.0
  %437 = vmatpush.msra.mxu0 0.0
  %438 = vmatpush.msra.mxu0 0.0
  %439 = vmatpush.msra.mxu0 0.0
  %440 = vmatpush.msra.mxu0 %v90
  %441 = vmatpush.msra.mxu0 %v89
  %442 = vmatpush.msra.mxu0 %v88
  %443 = vmatpush.msra.mxu0 %v87
  %444 = vmatmul.f32.gmra.mxu0 %v426
  %v445 = vpop.f32.mrf.mxu0
  %v446 = vadd.f32 0.0, %v445
  %447 = vdwg.mxu0
  %v449 = vsel %vm171, %v23, 0
  %451 = vmatpush.msra.mxu0 0.0
  %452 = vmatpush.msra.mxu0 0.0
  %453 = vmatpush.msra.mxu0 0.0
  %454 = vmatpush.msra.mxu0 0.0
  %455 = vmatpush.msra.mxu0 0.0
  %456 = vmatpush.msra.mxu0 0.0
  %457 = vmatpush.msra.mxu0 0.0
  %458 = vmatpush.msra.mxu0 0.0
  %459 = vmatpush.msra.mxu0 0.0
  %460 = vmatpush.msra.mxu0 0.0
  %461 = vmatpush.msra.mxu0 0.0
  %462 = vmatpush.msra.mxu0 0.0
  %463 = vmatpush.msra.mxu0 %v94
  %464 = vmatpush.msra.mxu0 %v93
  %465 = vmatpush.msra.mxu0 %v92
  %466 = vmatpush.msra.mxu0 %v91
  %467 = vmatmul.f32.gmra.mxu0 %v449
  %v468 = vpop.f32.mrf.mxu0
  %v469 = vadd.f32 0.0, %v468
  %470 = vdwg.mxu0
  %v472 = vsel %vm171, %v24, 0
  %474 = vmatpush.msra.mxu0 0.0
  %475 = vmatpush.msra.mxu0 0.0
  %476 = vmatpush.msra.mxu0 0.0
  %477 = vmatpush.msra.mxu0 0.0
  %478 = vmatpush.msra.mxu0 0.0
  %479 = vmatpush.msra.mxu0 0.0
  %480 = vmatpush.msra.mxu0 0.0
  %481 = vmatpush.msra.mxu0 0.0
  %482 = vmatpush.msra.mxu0 0.0
  %483 = vmatpush.msra.mxu0 0.0
  %484 = vmatpush.msra.mxu0 0.0
  %485 = vmatpush.msra.mxu0 0.0
  %486 = vmatpush.msra.mxu0 %v98
  %487 = vmatpush.msra.mxu0 %v97
  %488 = vmatpush.msra.mxu0 %v96
  %489 = vmatpush.msra.mxu0 %v95
  %490 = vmatmul.f32.gmra.mxu0 %v472
  %v491 = vpop.f32.mrf.mxu0
  %v492 = vadd.f32 0.0, %v491
  %493 = vdwg.mxu0
  %v495 = vsel %vm171, %v25, 0
  %497 = vmatpush.msra.mxu0 0.0
  %498 = vmatpush.msra.mxu0 0.0
  %499 = vmatpush.msra.mxu0 0.0
  %500 = vmatpush.msra.mxu0 0.0
  %501 = vmatpush.msra.mxu0 0.0
  %502 = vmatpush.msra.mxu0 0.0
  %503 = vmatpush.msra.mxu0 0.0
  %504 = vmatpush.msra.mxu0 0.0
  %505 = vmatpush.msra.mxu0 0.0
  %506 = vmatpush.msra.mxu0 0.0
  %507 = vmatpush.msra.mxu0 0.0
  %508 = vmatpush.msra.mxu0 0.0
  %509 = vmatpush.msra.mxu0 %v102
  %510 = vmatpush.msra.mxu0 %v101
  %511 = vmatpush.msra.mxu0 %v100
  %512 = vmatpush.msra.mxu0 %v99
  %513 = vmatmul.f32.gmra.mxu0 %v495
  %v514 = vpop.f32.mrf.mxu0
  %v515 = vadd.f32 0.0, %v514
  %516 = vdwg.mxu0
  %v518 = vsel %vm171, %v26, 0
  %520 = vmatpush.msra.mxu0 0.0
  %521 = vmatpush.msra.mxu0 0.0
  %522 = vmatpush.msra.mxu0 0.0
  %523 = vmatpush.msra.mxu0 0.0
  %524 = vmatpush.msra.mxu0 0.0
  %525 = vmatpush.msra.mxu0 0.0
  %526 = vmatpush.msra.mxu0 0.0
  %527 = vmatpush.msra.mxu0 0.0
  %528 = vmatpush.msra.mxu0 0.0
  %529 = vmatpush.msra.mxu0 0.0
  %530 = vmatpush.msra.mxu0 0.0
  %531 = vmatpush.msra.mxu0 0.0
  %532 = vmatpush.msra.mxu0 %v106
  %533 = vmatpush.msra.mxu0 %v105
  %534 = vmatpush.msra.mxu0 %v104
  %535 = vmatpush.msra.mxu0 %v103
  %536 = vmatmul.f32.gmra.mxu0 %v518
  %v537 = vpop.f32.mrf.mxu0
  %v538 = vadd.f32 0.0, %v537
  %539 = vdwg.mxu0
  %v541 = vsel %vm171, %v27, 0
  %543 = vmatpush.msra.mxu0 0.0
  %544 = vmatpush.msra.mxu0 0.0
  %545 = vmatpush.msra.mxu0 0.0
  %546 = vmatpush.msra.mxu0 0.0
  %547 = vmatpush.msra.mxu0 0.0
  %548 = vmatpush.msra.mxu0 0.0
  %549 = vmatpush.msra.mxu0 0.0
  %550 = vmatpush.msra.mxu0 0.0
  %551 = vmatpush.msra.mxu0 0.0
  %552 = vmatpush.msra.mxu0 0.0
  %553 = vmatpush.msra.mxu0 0.0
  %554 = vmatpush.msra.mxu0 0.0
  %555 = vmatpush.msra.mxu0 %v110
  %556 = vmatpush.msra.mxu0 %v109
  %557 = vmatpush.msra.mxu0 %v108
  %558 = vmatpush.msra.mxu0 %v107
  %559 = vmatmul.f32.gmra.mxu0 %v541
  %v560 = vpop.f32.mrf.mxu0
  %v561 = vadd.f32 0.0, %v560
  %562 = vdwg.mxu0
  %v564 = vsel %vm171, %v28, 0
  %566 = vmatpush.msra.mxu0 0.0
  %567 = vmatpush.msra.mxu0 0.0
  %568 = vmatpush.msra.mxu0 0.0
  %569 = vmatpush.msra.mxu0 0.0
  %570 = vmatpush.msra.mxu0 0.0
  %571 = vmatpush.msra.mxu0 0.0
  %572 = vmatpush.msra.mxu0 0.0
  %573 = vmatpush.msra.mxu0 0.0
  %574 = vmatpush.msra.mxu0 0.0
  %575 = vmatpush.msra.mxu0 0.0
  %576 = vmatpush.msra.mxu0 0.0
  %577 = vmatpush.msra.mxu0 0.0
  %578 = vmatpush.msra.mxu0 %v114
  %579 = vmatpush.msra.mxu0 %v113
  %580 = vmatpush.msra.mxu0 %v112
  %581 = vmatpush.msra.mxu0 %v111
  %582 = vmatmul.f32.gmra.mxu0 %v564
  %v583 = vpop.f32.mrf.mxu0
  %v584 = vadd.f32 0.0, %v583
  %585 = vdwg.mxu0
  %v587 = vsel %vm171, %v29, 0
  %589 = vmatpush.msra.mxu0 0.0
  %590 = vmatpush.msra.mxu0 0.0
  %591 = vmatpush.msra.mxu0 0.0
  %592 = vmatpush.msra.mxu0 0.0
  %593 = vmatpush.msra.mxu0 0.0
  %594 = vmatpush.msra.mxu0 0.0
  %595 = vmatpush.msra.mxu0 0.0
  %596 = vmatpush.msra.mxu0 0.0
  %597 = vmatpush.msra.mxu0 0.0
  %598 = vmatpush.msra.mxu0 0.0
  %599 = vmatpush.msra.mxu0 0.0
  %600 = vmatpush.msra.mxu0 0.0
  %601 = vmatpush.msra.mxu0 %v118
  %602 = vmatpush.msra.mxu0 %v117
  %603 = vmatpush.msra.mxu0 %v116
  %604 = vmatpush.msra.mxu0 %v115
  %605 = vmatmul.f32.gmra.mxu0 %v587
  %v606 = vpop.f32.mrf.mxu0
  %v607 = vadd.f32 0.0, %v606
  %608 = vdwg.mxu0
  %v610 = vsel %vm171, %v30, 0
  %612 = vmatpush.msra.mxu0 0.0
  %613 = vmatpush.msra.mxu0 0.0
  %614 = vmatpush.msra.mxu0 0.0
  %615 = vmatpush.msra.mxu0 0.0
  %616 = vmatpush.msra.mxu0 0.0
  %617 = vmatpush.msra.mxu0 0.0
  %618 = vmatpush.msra.mxu0 0.0
  %619 = vmatpush.msra.mxu0 0.0
  %620 = vmatpush.msra.mxu0 0.0
  %621 = vmatpush.msra.mxu0 0.0
  %622 = vmatpush.msra.mxu0 0.0
  %623 = vmatpush.msra.mxu0 0.0
  %624 = vmatpush.msra.mxu0 %v122
  %625 = vmatpush.msra.mxu0 %v121
  %626 = vmatpush.msra.mxu0 %v120
  %627 = vmatpush.msra.mxu0 %v119
  %628 = vmatmul.f32.gmra.mxu0 %v610
  %v629 = vpop.f32.mrf.mxu0
  %v630 = vadd.f32 0.0, %v629
  %631 = vdwg.mxu0
  %v633 = vsel %vm171, %v31, 0
  %635 = vmatpush.msra.mxu0 0.0
  %636 = vmatpush.msra.mxu0 0.0
  %637 = vmatpush.msra.mxu0 0.0
  %638 = vmatpush.msra.mxu0 0.0
  %639 = vmatpush.msra.mxu0 0.0
  %640 = vmatpush.msra.mxu0 0.0
  %641 = vmatpush.msra.mxu0 0.0
  %642 = vmatpush.msra.mxu0 0.0
  %643 = vmatpush.msra.mxu0 0.0
  %644 = vmatpush.msra.mxu0 0.0
  %645 = vmatpush.msra.mxu0 0.0
  %646 = vmatpush.msra.mxu0 0.0
  %647 = vmatpush.msra.mxu0 %v126
  %648 = vmatpush.msra.mxu0 %v125
  %649 = vmatpush.msra.mxu0 %v124
  %650 = vmatpush.msra.mxu0 %v123
  %651 = vmatmul.f32.gmra.mxu0 %v633
  %v652 = vpop.f32.mrf.mxu0
  %v653 = vadd.f32 0.0, %v652
  %654 = vdwg.mxu0
  %v656 = vsel %vm171, %v32, 0
  %658 = vmatpush.msra.mxu0 0.0
  %659 = vmatpush.msra.mxu0 0.0
  %660 = vmatpush.msra.mxu0 0.0
  %661 = vmatpush.msra.mxu0 0.0
  %662 = vmatpush.msra.mxu0 0.0
  %663 = vmatpush.msra.mxu0 0.0
  %664 = vmatpush.msra.mxu0 0.0
  %665 = vmatpush.msra.mxu0 0.0
  %666 = vmatpush.msra.mxu0 0.0
  %667 = vmatpush.msra.mxu0 0.0
  %668 = vmatpush.msra.mxu0 0.0
  %669 = vmatpush.msra.mxu0 0.0
  %670 = vmatpush.msra.mxu0 %v130
  %671 = vmatpush.msra.mxu0 %v129
  %672 = vmatpush.msra.mxu0 %v128
  %673 = vmatpush.msra.mxu0 %v127
  %674 = vmatmul.f32.gmra.mxu0 %v656
  %v675 = vpop.f32.mrf.mxu0
  %v676 = vadd.f32 0.0, %v675
  %677 = vdwg.mxu0
  %v679 = vsel %vm171, %v33, 0
  %681 = vmatpush.msra.mxu0 0.0
  %682 = vmatpush.msra.mxu0 0.0
  %683 = vmatpush.msra.mxu0 0.0
  %684 = vmatpush.msra.mxu0 0.0
  %685 = vmatpush.msra.mxu0 0.0
  %686 = vmatpush.msra.mxu0 0.0
  %687 = vmatpush.msra.mxu0 0.0
  %688 = vmatpush.msra.mxu0 0.0
  %689 = vmatpush.msra.mxu0 0.0
  %690 = vmatpush.msra.mxu0 0.0
  %691 = vmatpush.msra.mxu0 0.0
  %692 = vmatpush.msra.mxu0 0.0
  %693 = vmatpush.msra.mxu0 %v134
  %694 = vmatpush.msra.mxu0 %v133
  %695 = vmatpush.msra.mxu0 %v132
  %696 = vmatpush.msra.mxu0 %v131
  %697 = vmatmul.f32.gmra.mxu0 %v679
  %v698 = vpop.f32.mrf.mxu0
  %v699 = vadd.f32 0.0, %v698
  %700 = vdwg.mxu0
  %v702 = vsel %vm171, %v34, 0
  %704 = vmatpush.msra.mxu0 0.0
  %705 = vmatpush.msra.mxu0 0.0
  %706 = vmatpush.msra.mxu0 0.0
  %707 = vmatpush.msra.mxu0 0.0
  %708 = vmatpush.msra.mxu0 0.0
  %709 = vmatpush.msra.mxu0 0.0
  %710 = vmatpush.msra.mxu0 0.0
  %711 = vmatpush.msra.mxu0 0.0
  %712 = vmatpush.msra.mxu0 0.0
  %713 = vmatpush.msra.mxu0 0.0
  %714 = vmatpush.msra.mxu0 0.0
  %715 = vmatpush.msra.mxu0 0.0
  %716 = vmatpush.msra.mxu0 %v138
  %717 = vmatpush.msra.mxu0 %v137
  %718 = vmatpush.msra.mxu0 %v136
  %719 = vmatpush.msra.mxu0 %v135
  %720 = vmatmul.f32.gmra.mxu0 %v702
  %v721 = vpop.f32.mrf.mxu0
  %v722 = vadd.f32 0.0, %v721
  %723 = vdwg.mxu0
  %v725 = vsel %vm171, %v35, 0
  %727 = vmatpush.msra.mxu0 0.0
  %728 = vmatpush.msra.mxu0 0.0
  %729 = vmatpush.msra.mxu0 0.0
  %730 = vmatpush.msra.mxu0 0.0
  %731 = vmatpush.msra.mxu0 0.0
  %732 = vmatpush.msra.mxu0 0.0
  %733 = vmatpush.msra.mxu0 0.0
  %734 = vmatpush.msra.mxu0 0.0
  %735 = vmatpush.msra.mxu0 0.0
  %736 = vmatpush.msra.mxu0 0.0
  %737 = vmatpush.msra.mxu0 0.0
  %738 = vmatpush.msra.mxu0 0.0
  %739 = vmatpush.msra.mxu0 %v142
  %740 = vmatpush.msra.mxu0 %v141
  %741 = vmatpush.msra.mxu0 %v140
  %742 = vmatpush.msra.mxu0 %v139
  %743 = vmatmul.f32.gmra.mxu0 %v725
  %v744 = vpop.f32.mrf.mxu0
  %v745 = vadd.f32 0.0, %v744
  %746 = vdwg.mxu0
  %v748 = vsel %vm171, %v36, 0
  %750 = vmatpush.msra.mxu0 0.0
  %751 = vmatpush.msra.mxu0 0.0
  %752 = vmatpush.msra.mxu0 0.0
  %753 = vmatpush.msra.mxu0 0.0
  %754 = vmatpush.msra.mxu0 0.0
  %755 = vmatpush.msra.mxu0 0.0
  %756 = vmatpush.msra.mxu0 0.0
  %757 = vmatpush.msra.mxu0 0.0
  %758 = vmatpush.msra.mxu0 0.0
  %759 = vmatpush.msra.mxu0 0.0
  %760 = vmatpush.msra.mxu0 0.0
  %761 = vmatpush.msra.mxu0 0.0
  %762 = vmatpush.msra.mxu0 %v146
  %763 = vmatpush.msra.mxu0 %v145
  %764 = vmatpush.msra.mxu0 %v144
  %765 = vmatpush.msra.mxu0 %v143
  %766 = vmatmul.f32.gmra.mxu0 %v748
  %v767 = vpop.f32.mrf.mxu0
  %v768 = vadd.f32 0.0, %v767
  %769 = vdwg.mxu0
  %v771 = vsel %vm171, %v37, 0
  %773 = vmatpush.msra.mxu0 0.0
  %774 = vmatpush.msra.mxu0 0.0
  %775 = vmatpush.msra.mxu0 0.0
  %776 = vmatpush.msra.mxu0 0.0
  %777 = vmatpush.msra.mxu0 0.0
  %778 = vmatpush.msra.mxu0 0.0
  %779 = vmatpush.msra.mxu0 0.0
  %780 = vmatpush.msra.mxu0 0.0
  %781 = vmatpush.msra.mxu0 0.0
  %782 = vmatpush.msra.mxu0 0.0
  %783 = vmatpush.msra.mxu0 0.0
  %784 = vmatpush.msra.mxu0 0.0
  %785 = vmatpush.msra.mxu0 %v150
  %786 = vmatpush.msra.mxu0 %v149
  %787 = vmatpush.msra.mxu0 %v148
  %788 = vmatpush.msra.mxu0 %v147
  %789 = vmatmul.f32.gmra.mxu0 %v771
  %v790 = vpop.f32.mrf.mxu0
  %v791 = vadd.f32 0.0, %v790
  %792 = vdwg.mxu0
  %v794 = vsel %vm171, %v38, 0
  %796 = vmatpush.msra.mxu0 0.0
  %797 = vmatpush.msra.mxu0 0.0
  %798 = vmatpush.msra.mxu0 0.0
  %799 = vmatpush.msra.mxu0 0.0
  %800 = vmatpush.msra.mxu0 0.0
  %801 = vmatpush.msra.mxu0 0.0
  %802 = vmatpush.msra.mxu0 0.0
  %803 = vmatpush.msra.mxu0 0.0
  %804 = vmatpush.msra.mxu0 0.0
  %805 = vmatpush.msra.mxu0 0.0
  %806 = vmatpush.msra.mxu0 0.0
  %807 = vmatpush.msra.mxu0 0.0
  %808 = vmatpush.msra.mxu0 %v154
  %809 = vmatpush.msra.mxu0 %v153
  %810 = vmatpush.msra.mxu0 %v152
  %811 = vmatpush.msra.mxu0 %v151
  %812 = vmatmul.f32.gmra.mxu0 %v794
  %v813 = vpop.f32.mrf.mxu0
  %v814 = vadd.f32 0.0, %v813
  %815 = vdwg.mxu0
  %v817 = vsel %vm171, %v39, 0
  %819 = vmatpush.msra.mxu0 0.0
  %820 = vmatpush.msra.mxu0 0.0
  %821 = vmatpush.msra.mxu0 0.0
  %822 = vmatpush.msra.mxu0 0.0
  %823 = vmatpush.msra.mxu0 0.0
  %824 = vmatpush.msra.mxu0 0.0
  %825 = vmatpush.msra.mxu0 0.0
  %826 = vmatpush.msra.mxu0 0.0
  %827 = vmatpush.msra.mxu0 0.0
  %828 = vmatpush.msra.mxu0 0.0
  %829 = vmatpush.msra.mxu0 0.0
  %830 = vmatpush.msra.mxu0 0.0
  %831 = vmatpush.msra.mxu0 %v158
  %832 = vmatpush.msra.mxu0 %v157
  %833 = vmatpush.msra.mxu0 %v156
  %834 = vmatpush.msra.mxu0 %v155
  %835 = vmatmul.f32.gmra.mxu0 %v817
  %v836 = vpop.f32.mrf.mxu0
  %v837 = vadd.f32 0.0, %v836
  %838 = vdwg.mxu0
  %v840 = vsel %vm171, %v40, 0
  %842 = vmatpush.msra.mxu0 0.0
  %843 = vmatpush.msra.mxu0 0.0
  %844 = vmatpush.msra.mxu0 0.0
  %845 = vmatpush.msra.mxu0 0.0
  %846 = vmatpush.msra.mxu0 0.0
  %847 = vmatpush.msra.mxu0 0.0
  %848 = vmatpush.msra.mxu0 0.0
  %849 = vmatpush.msra.mxu0 0.0
  %850 = vmatpush.msra.mxu0 0.0
  %851 = vmatpush.msra.mxu0 0.0
  %852 = vmatpush.msra.mxu0 0.0
  %853 = vmatpush.msra.mxu0 0.0
  %854 = vmatpush.msra.mxu0 %v162
  %855 = vmatpush.msra.mxu0 %v161
  %856 = vmatpush.msra.mxu0 %v160
  %857 = vmatpush.msra.mxu0 %v159
  %858 = vmatmul.f32.gmra.mxu0 %v840
  %v859 = vpop.f32.mrf.mxu0
  %v860 = vadd.f32 0.0, %v859
  %861 = vdwg.mxu0
  %v863 = vsel %vm171, %v41, 0
  %865 = vmatpush.msra.mxu0 0.0
  %866 = vmatpush.msra.mxu0 0.0
  %867 = vmatpush.msra.mxu0 0.0
  %868 = vmatpush.msra.mxu0 0.0
  %869 = vmatpush.msra.mxu0 0.0
  %870 = vmatpush.msra.mxu0 0.0
  %871 = vmatpush.msra.mxu0 0.0
  %872 = vmatpush.msra.mxu0 0.0
  %873 = vmatpush.msra.mxu0 0.0
  %874 = vmatpush.msra.mxu0 0.0
  %875 = vmatpush.msra.mxu0 0.0
  %876 = vmatpush.msra.mxu0 0.0
  %877 = vmatpush.msra.mxu0 %v166
  %878 = vmatpush.msra.mxu0 %v165
  %879 = vmatpush.msra.mxu0 %v164
  %880 = vmatpush.msra.mxu0 %v163
  %881 = vmatmul.f32.gmra.mxu0 %v863
  %v882 = vpop.f32.mrf.mxu0
  %v883 = vadd.f32 0.0, %v882
  %884 = vdwg.mxu0
  %v886 = vsel %vm171, %v42, 0
  %888 = vmatpush.msra.mxu0 0.0
  %889 = vmatpush.msra.mxu0 0.0
  %890 = vmatpush.msra.mxu0 0.0
  %891 = vmatpush.msra.mxu0 0.0
  %892 = vmatpush.msra.mxu0 0.0
  %893 = vmatpush.msra.mxu0 0.0
  %894 = vmatpush.msra.mxu0 0.0
  %895 = vmatpush.msra.mxu0 0.0
  %896 = vmatpush.msra.mxu0 0.0
  %897 = vmatpush.msra.mxu0 0.0
  %898 = vmatpush.msra.mxu0 0.0
  %899 = vmatpush.msra.mxu0 0.0
  %900 = vmatpush.msra.mxu0 %v170
  %901 = vmatpush.msra.mxu0 %v169
  %902 = vmatpush.msra.mxu0 %v168
  %903 = vmatpush.msra.mxu0 %v167
  %904 = vmatmul.f32.gmra.mxu0 %v886
  %v905 = vpop.f32.mrf.mxu0
  %v906 = vadd.f32 0.0, %v905
  %907 = vdwg.mxu0
  %vm908 = vcmask 254976
  %909 = vst.msk [vmem:[%s2] sm:$0x3] %vm908, %v193
  %910 = vst.msk [vmem:[%s2 + $0x2] sm:$0x3] %vm908, %v216
  %911 = vst.msk [vmem:[%s2 + $0x4] sm:$0x3] %vm908, %v239
  %912 = vst.msk [vmem:[%s2 + $0x6] sm:$0x3] %vm908, %v262
  %913 = vst.msk [vmem:[%s2 + $0x8] sm:$0x3] %vm908, %v285
  %914 = vst.msk [vmem:[%s2 + $0xa] sm:$0x3] %vm908, %v308
  %915 = vst.msk [vmem:[%s2 + $0xc] sm:$0x3] %vm908, %v331
  %916 = vst.msk [vmem:[%s2 + $0xe] sm:$0x3] %vm908, %v354
  %917 = vst.msk [vmem:[%s2 + $0x10] sm:$0x3] %vm908, %v377
  %918 = vst.msk [vmem:[%s2 + $0x12] sm:$0x3] %vm908, %v400
  %919 = vst.msk [vmem:[%s2 + $0x14] sm:$0x3] %vm908, %v423
  %920 = vst.msk [vmem:[%s2 + $0x16] sm:$0x3] %vm908, %v446
  %921 = vst.msk [vmem:[%s2 + $0x18] sm:$0x3] %vm908, %v469
  %922 = vst.msk [vmem:[%s2 + $0x1a] sm:$0x3] %vm908, %v492
  %923 = vst.msk [vmem:[%s2 + $0x1c] sm:$0x3] %vm908, %v515
  %924 = vst.msk [vmem:[%s2 + $0x1e] sm:$0x3] %vm908, %v538
  %925 = vst.msk [vmem:[%s2 + $0x20] sm:$0x3] %vm908, %v561
  %926 = vst.msk [vmem:[%s2 + $0x22] sm:$0x3] %vm908, %v584
  %927 = vst.msk [vmem:[%s2 + $0x24] sm:$0x3] %vm908, %v607
  %928 = vst.msk [vmem:[%s2 + $0x26] sm:$0x3] %vm908, %v630
  %929 = vst.msk [vmem:[%s2 + $0x28] sm:$0x3] %vm908, %v653
  %930 = vst.msk [vmem:[%s2 + $0x2a] sm:$0x3] %vm908, %v676
  %931 = vst.msk [vmem:[%s2 + $0x2c] sm:$0x3] %vm908, %v699
  %932 = vst.msk [vmem:[%s2 + $0x2e] sm:$0x3] %vm908, %v722
  %933 = vst.msk [vmem:[%s2 + $0x30] sm:$0x3] %vm908, %v745
  %934 = vst.msk [vmem:[%s2 + $0x32] sm:$0x3] %vm908, %v768
  %935 = vst.msk [vmem:[%s2 + $0x34] sm:$0x3] %vm908, %v791
  %936 = vst.msk [vmem:[%s2 + $0x36] sm:$0x3] %vm908, %v814
  %937 = vst.msk [vmem:[%s2 + $0x38] sm:$0x3] %vm908, %v837
  %938 = vst.msk [vmem:[%s2 + $0x3a] sm:$0x3] %vm908, %v860
  %939 = vst.msk [vmem:[%s2 + $0x3c] sm:$0x3] %vm908, %v883
  %940 = vst.msk [vmem:[%s2 + $0x3e] sm:$0x3] %vm908, %v906
  // Predicated region
  $region10: #{fno2d_forward.10} parent=0 // pred_check
    _
  $region11: #{fno2d_forward.10} parent=0 // pred_check_branch
    %942 = sbr.rel (0) target = $region13
  $region12: #{fno2d_forward.10} parent=0 // pred_region
    _
  $region13: #{fno2d_forward.10} parent=0 // pred_fallthru
    _
  // Predicated region
  $region14: #{fno2d_forward.10} parent=0 // pred_check
    _
  $region15: #{fno2d_forward.10} parent=0 // pred_check_branch
    %944 = sbr.rel (0) target = $region17
  $region16: #{fno2d_forward.10} parent=0 // pred_region
    _
  $region17: #{fno2d_forward.10} parent=0 // pred_fallthru
    _

// kernel: reverse.8
$region0: #{reverse.8}
  #allocation0 [shape = 's32[1]{0}', space=sflag, size = 0x4, scoped, tag = 'scoped memory for reverse.8']
  %s0 = inlined_call_operand.vmem [shape: f32[16,2,16,7], index: 0, kind: input, shape index: {}]
  %s1 = inlined_call_operand.vmem [shape: f32[16,2,16,7], index: 1, kind: output, shape index: {}]
  %s2 = scalar_lea.vmem %s0, 96
  %v3 = vld [vmem:[%s2] sm:$0xff]
  %4 = vst [vmem:[%s1] sm:$0xff] %v3
  %s5 = scalar_lea.vmem %s0, 208
  %v6 = vld [vmem:[%s5] sm:$0xff]
  %s7 = scalar_lea.vmem %s1, 112
  %8 = vst [vmem:[%s7] sm:$0xff] %v6
  %s9 = scalar_lea.vmem %s0, 80
  %v10 = vld [vmem:[%s9] sm:$0xff]
  %s11 = scalar_lea.vmem %s1, 16
  %12 = vst [vmem:[%s11] sm:$0xff] %v10
  %s13 = scalar_lea.vmem %s0, 192
  %v14 = vld [vmem:[%s13] sm:$0xff]
  %s15 = scalar_lea.vmem %s1, 128
  %16 = vst [vmem:[%s15] sm:$0xff] %v14
  %s17 = scalar_lea.vmem %s0, 64
  %v18 = vld [vmem:[%s17] sm:$0xff]
  %s19 = scalar_lea.vmem %s1, 32
  %20 = vst [vmem:[%s19] sm:$0xff] %v18
  %s21 = scalar_lea.vmem %s0, 176
  %v22 = vld [vmem:[%s21] sm:$0xff]
  %s23 = scalar_lea.vmem %s1, 144
  %24 = vst [vmem:[%s23] sm:$0xff] %v22
  %s25 = scalar_lea.vmem %s0, 48
  %v26 = vld [vmem:[%s25] sm:$0xff]
  %s27 = scalar_lea.vmem %s1, 48
  %28 = vst [vmem:[%s27] sm:$0xff] %v26
  %s29 = scalar_lea.vmem %s0, 160
  %v30 = vld [vmem:[%s29] sm:$0xff]
  %s31 = scalar_lea.vmem %s1, 160
  %32 = vst [vmem:[%s31] sm:$0xff] %v30
  %s33 = scalar_lea.vmem %s0, 32
  %v34 = vld [vmem:[%s33] sm:$0xff]
  %s35 = scalar_lea.vmem %s1, 64
  %36 = vst [vmem:[%s35] sm:$0xff] %v34
  %s37 = scalar_lea.vmem %s0, 144
  %v38 = vld [vmem:[%s37] sm:$0xff]
  %s39 = scalar_lea.vmem %s1, 176
  %40 = vst [vmem:[%s39] sm:$0xff] %v38
  %s41 = scalar_lea.vmem %s0, 16
  %v42 = vld [vmem:[%s41] sm:$0xff]
  %s43 = scalar_lea.vmem %s1, 80
  %44 = vst [vmem:[%s43] sm:$0xff] %v42
  %s45 = scalar_lea.vmem %s0, 128
  %v46 = vld [vmem:[%s45] sm:$0xff]
  %s47 = scalar_lea.vmem %s1, 192
  %48 = vst [vmem:[%s47] sm:$0xff] %v46
  %v49 = vld [vmem:[%s0] sm:$0xff]
  %s50 = scalar_lea.vmem %s1, 96
  %51 = vst [vmem:[%s50] sm:$0xff] %v49
  %s52 = scalar_lea.vmem %s0, 112
  %v53 = vld [vmem:[%s52] sm:$0xff]
  %s54 = scalar_lea.vmem %s1, 208
  %55 = vst [vmem:[%s54] sm:$0xff] %v53
  %s56 = scalar_lea.vmem %s0, 104
  %v57 = vld [vmem:[%s56] sm:$0xff]
  %s58 = scalar_lea.vmem %s1, 8
  %59 = vst [vmem:[%s58] sm:$0xff] %v57
  %s60 = scalar_lea.vmem %s0, 216
  %v61 = vld [vmem:[%s60] sm:$0xff]
  %s62 = scalar_lea.vmem %s1, 120
  %63 = vst [vmem:[%s62] sm:$0xff] %v61
  %s64 = scalar_lea.vmem %s0, 88
  %v65 = vld [vmem:[%s64] sm:$0xff]
  %s66 = scalar_lea.vmem %s1, 24
  %67 = vst [vmem:[%s66] sm:$0xff] %v65
  %s68 = scalar_lea.vmem %s0, 200
  %v69 = vld [vmem:[%s68] sm:$0xff]
  %s70 = scalar_lea.vmem %s1, 136
  %71 = vst [vmem:[%s70] sm:$0xff] %v69
  %s72 = scalar_lea.vmem %s0, 72
  %v73 = vld [vmem:[%s72] sm:$0xff]
  %s74 = scalar_lea.vmem %s1, 40
  %75 = vst [vmem:[%s74] sm:$0xff] %v73
  %s76 = scalar_lea.vmem %s0, 184
  %v77 = vld [vmem:[%s76] sm:$0xff]
  %s78 = scalar_lea.vmem %s1, 152
  %79 = vst [vmem:[%s78] sm:$0xff] %v77
  %s80 = scalar_lea.vmem %s0, 56
  %v81 = vld [vmem:[%s80] sm:$0xff]
  %s82 = scalar_lea.vmem %s1, 56
  %83 = vst [vmem:[%s82] sm:$0xff] %v81
  %s84 = scalar_lea.vmem %s0, 168
  %v85 = vld [vmem:[%s84] sm:$0xff]
  %s86 = scalar_lea.vmem %s1, 168
  %87 = vst [vmem:[%s86] sm:$0xff] %v85
  %s88 = scalar_lea.vmem %s0, 40
  %v89 = vld [vmem:[%s88] sm:$0xff]
  %s90 = scalar_lea.vmem %s1, 72
  %91 = vst [vmem:[%s90] sm:$0xff] %v89
  %s92 = scalar_lea.vmem %s0, 152
  %v93 = vld [vmem:[%s92] sm:$0xff]
  %s94 = scalar_lea.vmem %s1, 184
  %95 = vst [vmem:[%s94] sm:$0xff] %v93
  %s96 = scalar_lea.vmem %s0, 24
  %v97 = vld [vmem:[%s96] sm:$0xff]
  %s98 = scalar_lea.vmem %s1, 88
  %99 = vst [vmem:[%s98] sm:$0xff] %v97
  %s100 = scalar_lea.vmem %s0, 136
  %v101 = vld [vmem:[%s100] sm:$0xff]
  %s102 = scalar_lea.vmem %s1, 200
  %103 = vst [vmem:[%s102] sm:$0xff] %v101
  %s104 = scalar_lea.vmem %s0, 8
  %v105 = vld [vmem:[%s104] sm:$0xff]
  %s106 = scalar_lea.vmem %s1, 104
  %107 = vst [vmem:[%s106] sm:$0xff] %v105
  %s108 = scalar_lea.vmem %s0, 120
  %v109 = vld [vmem:[%s108] sm:$0xff]
  %s110 = scalar_lea.vmem %s1, 216
  %111 = vst [vmem:[%s110] sm:$0xff] %v109

// kernel: fno2d_forward.11
$region0: #{fno2d_forward.11}
  #allocation0 [shape = 'u32[]', space=smem, size = 0x4, offset = 0x4, fixed_abs, tag = 'smem constant byte address 0x4 - core index']
  #allocation1 [shape = 'u32[72,128]{1,0:T(1,128)}', space=vmem, size = 0x9000, scoped, tag = 'internal scratch']
  %s0 = inlined_call_operand.vmem [shape: f32[16,512], index: 0, kind: input, shape index: {}]
  %s1 = inlined_call_operand.vmem [shape: f32[16,512], index: 1, kind: input, shape index: {}]
  %s2 = inlined_call_operand.vmem [shape: f32[16,16], index: 2, kind: input, shape index: {}]
  %s3 = inlined_call_operand.vmem [shape: f32[16,1], index: 3, kind: input, shape index: {}]
  %s4 = inlined_call_operand.vmem [shape: f32[16,512], index: 4, kind: output, shape index: {}]
  %s5 = sld [smem:[#allocation0]]
  $region26: #{fno2d_forward.11} parent=0
    _
  %s7 = ssub.s32 1, %s5
  %s8 = scalar_select 0, %s7, %s5
  // Predicated region
  $region2: #{fno2d_forward.11} parent=0 // pred_check
    _
  $region3: #{fno2d_forward.11} parent=0 // pred_check_branch
    %10 = sbr.rel (0) target = $region5
  $region4: #{fno2d_forward.11} parent=0 // pred_region
    _
  $region5: #{fno2d_forward.11} parent=0 // pred_fallthru
    _
  // Predicated region
  $region6: #{fno2d_forward.11} parent=0 // pred_check
    _
  $region7: #{fno2d_forward.11} parent=0 // pred_check_branch
    %12 = sbr.rel (0) target = $region9
  $region8: #{fno2d_forward.11} parent=0 // pred_region
    _
  $region9: #{fno2d_forward.11} parent=0 // pred_fallthru
    _
  // Predicated region
  $region10: #{fno2d_forward.11} parent=0 // pred_check
    _
  $region11: #{fno2d_forward.11} parent=0 // pred_check_branch
    %14 = sbr.rel (0) target = $region13
  $region12: #{fno2d_forward.11} parent=0 // pred_region
    _
  $region13: #{fno2d_forward.11} parent=0 // pred_fallthru
    _
  // Predicated region
  $region14: #{fno2d_forward.11} parent=0 // pred_check
    _
  $region15: #{fno2d_forward.11} parent=0 // pred_check_branch
    %16 = sbr.rel (0) target = $region17
  $region16: #{fno2d_forward.11} parent=0 // pred_region
    _
  $region17: #{fno2d_forward.11} parent=0 // pred_fallthru
    _
  %v17 = vld [vmem:[%s2] sm:$0xff]
  %v18 = vld [vmem:[%s2 + $0x8] sm:$0xff]
  %v19 = vld [vmem:[%s0] sm:$0xff]
  %v20 = vld [vmem:[%s0 + $0x8] sm:$0xff]
  %v21 = vld [vmem:[%s0 + $0x10] sm:$0xff]
  %v22 = vld [vmem:[%s0 + $0x18] sm:$0xff]
  %v23 = vld [vmem:[%s0 + $0x20] sm:$0xff]
  %v24 = vld [vmem:[%s0 + $0x28] sm:$0xff]
  %v25 = vld [vmem:[%s0 + $0x30] sm:$0xff]
  %v26 = vld [vmem:[%s0 + $0x38] sm:$0xff]
  %v27 = vld [vmem:[%s3] sm:$0xff]
  %v28 = vld [vmem:[%s3 + $0x8] sm:$0xff]
  %30 = vset.pattern.permute.xlu0 0
  %31 = vperm.xlu0 %30, %v27
  %v32 = vpop.permute.xlu0 %31
  %35 = vset.pattern.permute.xlu0 0
  %36 = vperm.xlu0 %35, %v28
  %v37 = vpop.permute.xlu0 %36
  %vm39 = vcmask 130048
  %v41 = vsel %vm39, %v17, 0
  %v44 = vsel %vm39, %v18, 0
  %46 = vmatpush.msra.mxu0 0.0
  %47 = vmatpush.msra.mxu0 0.0
  %48 = vmatpush.msra.mxu0 0.0
  %49 = vmatpush.msra.mxu0 0.0
  %50 = vmatpush.msra.mxu0 0.0
  %51 = vmatpush.msra.mxu0 0.0
  %52 = vmatpush.msra.mxu0 0.0
  %53 = vmatpush.msra.mxu0 0.0
  %54 = vmatpush.msra.mxu0 0.0
  %55 = vmatpush.msra.mxu0 0.0
  %56 = vmatpush.msra.mxu0 0.0
  %57 = vmatpush.msra.mxu0 0.0
  %58 = vmatpush.msra.mxu0 0.0
  %59 = vmatpush.msra.mxu0 0.0
  %60 = vmatpush.msra.mxu0 %v23
  %61 = vmatpush.msra.mxu0 %v19
  %62 = vmatmul.f32.gmra.mxu0 %v41
  %v63 = vpop.f32.mrf.mxu0
  %v64 = vadd.f32 %v32, %v63
  %65 = vmatmul.f32.gmra.mxu0 %v44
  %v66 = vpop.f32.mrf.mxu0
  %v67 = vadd.f32 %v37, %v66
  %68 = vdwg.mxu0
  %69 = vmatpush.msra.mxu0 0.0
  %70 = vmatpush.msra.mxu0 0.0
  %71 = vmatpush.msra.mxu0 0.0
  %72 = vmatpush.msra.mxu0 0.0
  %73 = vmatpush.msra.mxu0 0.0
  %74 = vmatpush.msra.mxu0 0.0
  %75 = vmatpush.msra.mxu0 0.0
  %76 = vmatpush.msra.mxu0 0.0
  %77 = vmatpush.msra.mxu0 0.0
  %78 = vmatpush.msra.mxu0 0.0
  %79 = vmatpush.msra.mxu0 0.0
  %80 = vmatpush.msra.mxu0 0.0
  %81 = vmatpush.msra.mxu0 0.0
  %82 = vmatpush.msra.mxu0 0.0
  %83 = vmatpush.msra.mxu0 %v24
  %84 = vmatpush.msra.mxu0 %v20
  %85 = vmatmul.f32.gmra.mxu0 %v41
  %v86 = vpop.f32.mrf.mxu0
  %v87 = vadd.f32 %v32, %v86
  %88 = vmatmul.f32.gmra.mxu0 %v44
  %v89 = vpop.f32.mrf.mxu0
  %v90 = vadd.f32 %v37, %v89
  %91 = vdwg.mxu0
  %92 = vmatpush.msra.mxu0 0.0
  %93 = vmatpush.msra.mxu0 0.0
  %94 = vmatpush.msra.mxu0 0.0
  %95 = vmatpush.msra.mxu0 0.0
  %96 = vmatpush.msra.mxu0 0.0
  %97 = vmatpush.msra.mxu0 0.0
  %98 = vmatpush.msra.mxu0 0.0
  %99 = vmatpush.msra.mxu0 0.0
  %100 = vmatpush.msra.mxu0 0.0
  %101 = vmatpush.msra.mxu0 0.0
  %102 = vmatpush.msra.mxu0 0.0
  %103 = vmatpush.msra.mxu0 0.0
  %104 = vmatpush.msra.mxu0 0.0
  %105 = vmatpush.msra.mxu0 0.0
  %106 = vmatpush.msra.mxu0 %v25
  %107 = vmatpush.msra.mxu0 %v21
  %108 = vmatmul.f32.gmra.mxu0 %v41
  %v109 = vpop.f32.mrf.mxu0
  %v110 = vadd.f32 %v32, %v109
  %111 = vmatmul.f32.gmra.mxu0 %v44
  %v112 = vpop.f32.mrf.mxu0
  %v113 = vadd.f32 %v37, %v112
  %114 = vdwg.mxu0
  %115 = vmatpush.msra.mxu0 0.0
  %116 = vmatpush.msra.mxu0 0.0
  %117 = vmatpush.msra.mxu0 0.0
  %118 = vmatpush.msra.mxu0 0.0
  %119 = vmatpush.msra.mxu0 0.0
  %120 = vmatpush.msra.mxu0 0.0
  %121 = vmatpush.msra.mxu0 0.0
  %122 = vmatpush.msra.mxu0 0.0
  %123 = vmatpush.msra.mxu0 0.0
  %124 = vmatpush.msra.mxu0 0.0
  %125 = vmatpush.msra.mxu0 0.0
  %126 = vmatpush.msra.mxu0 0.0
  %127 = vmatpush.msra.mxu0 0.0
  %128 = vmatpush.msra.mxu0 0.0
  %129 = vmatpush.msra.mxu0 %v26
  %130 = vmatpush.msra.mxu0 %v22
  %131 = vmatmul.f32.gmra.mxu0 %v41
  %v132 = vpop.f32.mrf.mxu0
  %v133 = vadd.f32 %v32, %v132
  %134 = vmatmul.f32.gmra.mxu0 %v44
  %v135 = vpop.f32.mrf.mxu0
  %v136 = vadd.f32 %v37, %v135
  %137 = vdwg.mxu0
  %v138 = vld [vmem:[%s1] sm:$0xff]
  %v139 = vld [vmem:[%s1 + $0x8] sm:$0xff]
  %v140 = vld [vmem:[%s1 + $0x10] sm:$0xff]
  %v141 = vld [vmem:[%s1 + $0x18] sm:$0xff]
  %v142 = vld [vmem:[%s1 + $0x20] sm:$0xff]
  %v143 = vld [vmem:[%s1 + $0x28] sm:$0xff]
  %v144 = vld [vmem:[%s1 + $0x30] sm:$0xff]
  %v145 = vld [vmem:[%s1 + $0x38] sm:$0xff]
  %v146 = vadd.f32 %v64, %v138
  %v147 = vadd.f32 %v87, %v139
  %v148 = vadd.f32 %v110, %v140
  %v149 = vadd.f32 %v133, %v141
  %v150 = vadd.f32 %v67, %v142
  %v151 = vadd.f32 %v90, %v143
  %v152 = vadd.f32 %v113, %v144
  %v153 = vadd.f32 %v136, %v145
  %v154 = vmax.f32 %v146, 0.0
  %v155 = vmax.f32 %v147, 0.0
  %v156 = vmax.f32 %v148, 0.0
  %v157 = vmax.f32 %v149, 0.0
  %v158 = vmax.f32 %v150, 0.0
  %v159 = vmax.f32 %v151, 0.0
  %v160 = vmax.f32 %v152, 0.0
  %v161 = vmax.f32 %v153, 0.0
  %162 = vst [vmem:[%s4] sm:$0xff] %v154
  %163 = vst [vmem:[%s4 + $0x8] sm:$0xff] %v155
  %164 = vst [vmem:[%s4 + $0x10] sm:$0xff] %v156
  %165 = vst [vmem:[%s4 + $0x18] sm:$0xff] %v157
  %166 = vst [vmem:[%s4 + $0x20] sm:$0xff] %v158
  %167 = vst [vmem:[%s4 + $0x28] sm:$0xff] %v159
  %168 = vst [vmem:[%s4 + $0x30] sm:$0xff] %v160
  %169 = vst [vmem:[%s4 + $0x38] sm:$0xff] %v161
  // Predicated region
  $region18: #{fno2d_forward.11} parent=0 // pred_check
    _
  $region19: #{fno2d_forward.11} parent=0 // pred_check_branch
    %171 = sbr.rel (0) target = $region21
  $region20: #{fno2d_forward.11} parent=0 // pred_region
    _
  $region21: #{fno2d_forward.11} parent=0 // pred_fallthru
    _
  // Predicated region
  $region22: #{fno2d_forward.11} parent=0 // pred_check
    _
  $region23: #{fno2d_forward.11} parent=0 // pred_check_branch
    %173 = sbr.rel (0) target = $region25
  $region24: #{fno2d_forward.11} parent=0 // pred_region
    _
  $region25: #{fno2d_forward.11} parent=0 // pred_fallthru
    _

// kernel: fno2d_forward.17
$region0: #{fno2d_forward.17}
  #allocation0 [shape = 'u32[]', space=smem, size = 0x4, offset = 0x4, fixed_abs, tag = 'smem constant byte address 0x4 - core index']
  #allocation1 [shape = 'u32[72,128]{1,0:T(1,128)}', space=vmem, size = 0x9000, scoped, tag = 'internal scratch']
  #allocation2 [shape = 'f32[1,1]{1,0:T(1,128)S(1)}', space=vmem, size = 0x200, scoped, tag = 'scoped memory for fno2d_forward.17']
  %s0 = inlined_call_operand.vmem [shape: f32[16,512], index: 0, kind: input, shape index: {}]
  %s1 = inlined_call_operand.vmem [shape: f32[16,512], index: 1, kind: input, shape index: {}]
  %s2 = inlined_call_operand.vmem [shape: f32[16,16], index: 2, kind: input, shape index: {}]
  %s3 = inlined_call_operand.vmem [shape: f32[16,1], index: 3, kind: input, shape index: {}]
  %s4 = inlined_call_operand.vmem [shape: f32[128,16], index: 4, kind: input, shape index: {}]
  %s5 = inlined_call_operand.vmem [shape: f32[128,1], index: 5, kind: input, shape index: {}]
  %s6 = inlined_call_operand.vmem [shape: f32[1,128], index: 6, kind: input, shape index: {}]
  %s7 = inlined_call_operand.<no memory space> [shape: f32[1,1], index: 7, kind: input, shape index: {}]
  %s8 = inlined_call_operand.vmem [shape: f32[1,512], index: 8, kind: output, shape index: {}]
  %s9 = sld [smem:[#allocation0]]
  $region42: #{fno2d_forward.17} parent=0
    _
  %s11 = ssub.s32 1, %s9
  %s12 = scalar_select 0, %s11, %s9
  %v13 = vstv %s7
  %14 = vst [vmem:[#allocation2] sm:$0x1] %v13
  // Predicated region
  $region2: #{fno2d_forward.17} parent=0 // pred_check
    _
  $region3: #{fno2d_forward.17} parent=0 // pred_check_branch
    %16 = sbr.rel (0) target = $region5
  $region4: #{fno2d_forward.17} parent=0 // pred_region
    _
  $region5: #{fno2d_forward.17} parent=0 // pred_fallthru
    _
  // Predicated region
  $region6: #{fno2d_forward.17} parent=0 // pred_check
    _
  $region7: #{fno2d_forward.17} parent=0 // pred_check_branch
    %18 = sbr.rel (0) target = $region9
  $region8: #{fno2d_forward.17} parent=0 // pred_region
    _
  $region9: #{fno2d_forward.17} parent=0 // pred_fallthru
    _
  // Predicated region
  $region10: #{fno2d_forward.17} parent=0 // pred_check
    _
  $region11: #{fno2d_forward.17} parent=0 // pred_check_branch
    %20 = sbr.rel (0) target = $region13
  $region12: #{fno2d_forward.17} parent=0 // pred_region
    _
  $region13: #{fno2d_forward.17} parent=0 // pred_fallthru
    _
  // Predicated region
  $region14: #{fno2d_forward.17} parent=0 // pred_check
    _
  $region15: #{fno2d_forward.17} parent=0 // pred_check_branch
    %22 = sbr.rel (0) target = $region17
  $region16: #{fno2d_forward.17} parent=0 // pred_region
    _
  $region17: #{fno2d_forward.17} parent=0 // pred_fallthru
    _
  // Predicated region
  $region18: #{fno2d_forward.17} parent=0 // pred_check
    _
  $region19: #{fno2d_forward.17} parent=0 // pred_check_branch
    %24 = sbr.rel (0) target = $region21
  $region20: #{fno2d_forward.17} parent=0 // pred_region
    _
  $region21: #{fno2d_forward.17} parent=0 // pred_fallthru
    _
  // Predicated region
  $region22: #{fno2d_forward.17} parent=0 // pred_check
    _
  $region23: #{fno2d_forward.17} parent=0 // pred_check_branch
    %26 = sbr.rel (0) target = $region25
  $region24: #{fno2d_forward.17} parent=0 // pred_region
    _
  $region25: #{fno2d_forward.17} parent=0 // pred_fallthru
    _
  // Predicated region
  $region26: #{fno2d_forward.17} parent=0 // pred_check
    _
  $region27: #{fno2d_forward.17} parent=0 // pred_check_branch
    %28 = sbr.rel (0) target = $region29
  $region28: #{fno2d_forward.17} parent=0 // pred_region
    _
  $region29: #{fno2d_forward.17} parent=0 // pred_fallthru
    _
  // Predicated region
  $region30: #{fno2d_forward.17} parent=0 // pred_check
    _
  $region31: #{fno2d_forward.17} parent=0 // pred_check_branch
    %30 = sbr.rel (0) target = $region33
  $region32: #{fno2d_forward.17} parent=0 // pred_region
    _
  $region33: #{fno2d_forward.17} parent=0 // pred_fallthru
    _
  %v31 = vld [vmem:[%s2] sm:$0xff]
  %v32 = vld [vmem:[%s2 + $0x8] sm:$0xff]
  %v33 = vld [vmem:[%s0] sm:$0xff]
  %v34 = vld [vmem:[%s0 + $0x8] sm:$0xff]
  %v35 = vld [vmem:[%s0 + $0x10] sm:$0xff]
  %v36 = vld [vmem:[%s0 + $0x18] sm:$0xff]
  %v37 = vld [vmem:[%s0 + $0x20] sm:$0xff]
  %v38 = vld [vmem:[%s0 + $0x28] sm:$0xff]
  %v39 = vld [vmem:[%s0 + $0x30] sm:$0xff]
  %v40 = vld [vmem:[%s0 + $0x38] sm:$0xff]
  %v41 = vld [vmem:[%s3] sm:$0xff]
  %v42 = vld [vmem:[%s3 + $0x8] sm:$0xff]
  %44 = vset.pattern.permute.xlu0 0
  %45 = vperm.xlu0 %44, %v41
  %v46 = vpop.permute.xlu0 %45
  %49 = vset.pattern.permute.xlu0 0
  %50 = vperm.xlu0 %49, %v42
  %v51 = vpop.permute.xlu0 %50
  %vm53 = vcmask 130048
  %v55 = vsel %vm53, %v31, 0
  %v58 = vsel %vm53, %v32, 0
  %60 = vmatpush.msra.mxu0 0.0
  %61 = vmatpush.msra.mxu0 0.0
  %62 = vmatpush.msra.mxu0 0.0
  %63 = vmatpush.msra.mxu0 0.0
  %64 = vmatpush.msra.mxu0 0.0
  %65 = vmatpush.msra.mxu0 0.0
  %66 = vmatpush.msra.mxu0 0.0
  %67 = vmatpush.msra.mxu0 0.0
  %68 = vmatpush.msra.mxu0 0.0
  %69 = vmatpush.msra.mxu0 0.0
  %70 = vmatpush.msra.mxu0 0.0
  %71 = vmatpush.msra.mxu0 0.0
  %72 = vmatpush.msra.mxu0 0.0
  %73 = vmatpush.msra.mxu0 0.0
  %74 = vmatpush.msra.mxu0 %v37
  %75 = vmatpush.msra.mxu0 %v33
  %76 = vmatmul.f32.gmra.mxu0 %v55
  %v77 = vpop.f32.mrf.mxu0
  %v78 = vadd.f32 %v46, %v77
  %79 = vmatmul.f32.gmra.mxu0 %v58
  %v80 = vpop.f32.mrf.mxu0
  %v81 = vadd.f32 %v51, %v80
  %82 = vdwg.mxu0
  %83 = vmatpush.msra.mxu0 0.0
  %84 = vmatpush.msra.mxu0 0.0
  %85 = vmatpush.msra.mxu0 0.0
  %86 = vmatpush.msra.mxu0 0.0
  %87 = vmatpush.msra.mxu0 0.0
  %88 = vmatpush.msra.mxu0 0.0
  %89 = vmatpush.msra.mxu0 0.0
  %90 = vmatpush.msra.mxu0 0.0
  %91 = vmatpush.msra.mxu0 0.0
  %92 = vmatpush.msra.mxu0 0.0
  %93 = vmatpush.msra.mxu0 0.0
  %94 = vmatpush.msra.mxu0 0.0
  %95 = vmatpush.msra.mxu0 0.0
  %96 = vmatpush.msra.mxu0 0.0
  %97 = vmatpush.msra.mxu0 %v38
  %98 = vmatpush.msra.mxu0 %v34
  %99 = vmatmul.f32.gmra.mxu0 %v55
  %v100 = vpop.f32.mrf.mxu0
  %v101 = vadd.f32 %v46, %v100
  %102 = vmatmul.f32.gmra.mxu0 %v58
  %v103 = vpop.f32.mrf.mxu0
  %v104 = vadd.f32 %v51, %v103
  %105 = vdwg.mxu0
  %106 = vmatpush.msra.mxu0 0.0
  %107 = vmatpush.msra.mxu0 0.0
  %108 = vmatpush.msra.mxu0 0.0
  %109 = vmatpush.msra.mxu0 0.0
  %110 = vmatpush.msra.mxu0 0.0
  %111 = vmatpush.msra.mxu0 0.0
  %112 = vmatpush.msra.mxu0 0.0
  %113 = vmatpush.msra.mxu0 0.0
  %114 = vmatpush.msra.mxu0 0.0
  %115 = vmatpush.msra.mxu0 0.0
  %116 = vmatpush.msra.mxu0 0.0
  %117 = vmatpush.msra.mxu0 0.0
  %118 = vmatpush.msra.mxu0 0.0
  %119 = vmatpush.msra.mxu0 0.0
  %120 = vmatpush.msra.mxu0 %v39
  %121 = vmatpush.msra.mxu0 %v35
  %122 = vmatmul.f32.gmra.mxu0 %v55
  %v123 = vpop.f32.mrf.mxu0
  %v124 = vadd.f32 %v46, %v123
  %125 = vmatmul.f32.gmra.mxu0 %v58
  %v126 = vpop.f32.mrf.mxu0
  %v127 = vadd.f32 %v51, %v126
  %128 = vdwg.mxu0
  %129 = vmatpush.msra.mxu0 0.0
  %130 = vmatpush.msra.mxu0 0.0
  %131 = vmatpush.msra.mxu0 0.0
  %132 = vmatpush.msra.mxu0 0.0
  %133 = vmatpush.msra.mxu0 0.0
  %134 = vmatpush.msra.mxu0 0.0
  %135 = vmatpush.msra.mxu0 0.0
  %136 = vmatpush.msra.mxu0 0.0
  %137 = vmatpush.msra.mxu0 0.0
  %138 = vmatpush.msra.mxu0 0.0
  %139 = vmatpush.msra.mxu0 0.0
  %140 = vmatpush.msra.mxu0 0.0
  %141 = vmatpush.msra.mxu0 0.0
  %142 = vmatpush.msra.mxu0 0.0
  %143 = vmatpush.msra.mxu0 %v40
  %144 = vmatpush.msra.mxu0 %v36
  %145 = vmatmul.f32.gmra.mxu0 %v55
  %v146 = vpop.f32.mrf.mxu0
  %v147 = vadd.f32 %v46, %v146
  %148 = vmatmul.f32.gmra.mxu0 %v58
  %v149 = vpop.f32.mrf.mxu0
  %v150 = vadd.f32 %v51, %v149
  %151 = vdwg.mxu0
  %v152 = vld [vmem:[%s1] sm:$0xff]
  %v153 = vld [vmem:[%s1 + $0x8] sm:$0xff]
  %v154 = vld [vmem:[%s1 + $0x10] sm:$0xff]
  %v155 = vld [vmem:[%s1 + $0x18] sm:$0xff]
  %v156 = vld [vmem:[%s1 + $0x20] sm:$0xff]
  %v157 = vld [vmem:[%s1 + $0x28] sm:$0xff]
  %v158 = vld [vmem:[%s1 + $0x30] sm:$0xff]
  %v159 = vld [vmem:[%s1 + $0x38] sm:$0xff]
  %v160 = vadd.f32 %v78, %v152
  %v161 = vadd.f32 %v101, %v153
  %v162 = vadd.f32 %v124, %v154
  %v163 = vadd.f32 %v147, %v155
  %v164 = vadd.f32 %v81, %v156
  %v165 = vadd.f32 %v104, %v157
  %v166 = vadd.f32 %v127, %v158
  %v167 = vadd.f32 %v150, %v159
  %v168 = vld [vmem:[%s4] sm:$0xff]
  %v169 = vld [vmem:[%s4 + $0x8] sm:$0xff]
  %v170 = vld [vmem:[%s4 + $0x10] sm:$0xff]
  %v171 = vld [vmem:[%s4 + $0x18] sm:$0xff]
  %v172 = vld [vmem:[%s4 + $0x20] sm:$0xff]
  %v173 = vld [vmem:[%s4 + $0x28] sm:$0xff]
  %v174 = vld [vmem:[%s4 + $0x30] sm:$0xff]
  %v175 = vld [vmem:[%s4 + $0x38] sm:$0xff]
  %v176 = vld [vmem:[%s4 + $0x40] sm:$0xff]
  %v177 = vld [vmem:[%s4 + $0x48] sm:$0xff]
  %v178 = vld [vmem:[%s4 + $0x50] sm:$0xff]
  %v179 = vld [vmem:[%s4 + $0x58] sm:$0xff]
  %v180 = vld [vmem:[%s4 + $0x60] sm:$0xff]
  %v181 = vld [vmem:[%s4 + $0x68] sm:$0xff]
  %v182 = vld [vmem:[%s4 + $0x70] sm:$0xff]
  %v183 = vld [vmem:[%s4 + $0x78] sm:$0xff]
  %v184 = vld [vmem:[%s5] sm:$0xff]
  %v185 = vld [vmem:[%s5 + $0x8] sm:$0xff]
  %v186 = vld [vmem:[%s5 + $0x10] sm:$0xff]
  %v187 = vld [vmem:[%s5 + $0x18] sm:$0xff]
  %v188 = vld [vmem:[%s5 + $0x20] sm:$0xff]
  %v189 = vld [vmem:[%s5 + $0x28] sm:$0xff]
  %v190 = vld [vmem:[%s5 + $0x30] sm:$0xff]
  %v191 = vld [vmem:[%s5 + $0x38] sm:$0xff]
  %v192 = vld [vmem:[%s5 + $0x40] sm:$0xff]
  %v193 = vld [vmem:[%s5 + $0x48] sm:$0xff]
  %v194 = vld [vmem:[%s5 + $0x50] sm:$0xff]
  %v195 = vld [vmem:[%s5 + $0x58] sm:$0xff]
  %v196 = vld [vmem:[%s5 + $0x60] sm:$0xff]
  %v197 = vld [vmem:[%s5 + $0x68] sm:$0xff]
  %v198 = vld [vmem:[%s5 + $0x70] sm:$0xff]
  %v199 = vld [vmem:[%s5 + $0x78] sm:$0xff]
  %201 = vset.pattern.permute.xlu0 0
  %202 = vperm.xlu0 %201, %v184
  %v203 = vpop.permute.xlu0 %202
  %206 = vset.pattern.permute.xlu0 0
  %207 = vperm.xlu0 %206, %v185
  %v208 = vpop.permute.xlu0 %207
  %211 = vset.pattern.permute.xlu0 0
  %212 = vperm.xlu0 %211, %v186
  %v213 = vpop.permute.xlu0 %212
  %216 = vset.pattern.permute.xlu0 0
  %217 = vperm.xlu0 %216, %v187
  %v218 = vpop.permute.xlu0 %217
  %221 = vset.pattern.permute.xlu0 0
  %222 = vperm.xlu0 %221, %v188
  %v223 = vpop.permute.xlu0 %222
  %226 = vset.pattern.permute.xlu0 0
  %227 = vperm.xlu0 %226, %v189
  %v228 = vpop.permute.xlu0 %227
  %231 = vset.pattern.permute.xlu0 0
  %232 = vperm.xlu0 %231, %v190
  %v233 = vpop.permute.xlu0 %232
  %236 = vset.pattern.permute.xlu0 0
  %237 = vperm.xlu0 %236, %v191
  %v238 = vpop.permute.xlu0 %237
  %241 = vset.pattern.permute.xlu0 0
  %242 = vperm.xlu0 %241, %v192
  %v243 = vpop.permute.xlu0 %242
  %246 = vset.pattern.permute.xlu0 0
  %247 = vperm.xlu0 %246, %v193
  %v248 = vpop.permute.xlu0 %247
  %251 = vset.pattern.permute.xlu0 0
  %252 = vperm.xlu0 %251, %v194
  %v253 = vpop.permute.xlu0 %252
  %256 = vset.pattern.permute.xlu0 0
  %257 = vperm.xlu0 %256, %v195
  %v258 = vpop.permute.xlu0 %257
  %261 = vset.pattern.permute.xlu0 0
  %262 = vperm.xlu0 %261, %v196
  %v263 = vpop.permute.xlu0 %262
  %266 = vset.pattern.permute.xlu0 0
  %267 = vperm.xlu0 %266, %v197
  %v268 = vpop.permute.xlu0 %267
  %271 = vset.pattern.permute.xlu0 0
  %272 = vperm.xlu0 %271, %v198
  %v273 = vpop.permute.xlu0 %272
  %276 = vset.pattern.permute.xlu0 0
  %277 = vperm.xlu0 %276, %v199
  %v278 = vpop.permute.xlu0 %277
  %v281 = vsel %vm53, %v168, 0
  %v284 = vsel %vm53, %v169, 0
  %v287 = vsel %vm53, %v170, 0
  %v290 = vsel %vm53, %v171, 0
  %v293 = vsel %vm53, %v172, 0
  %v296 = vsel %vm53, %v173, 0
  %v299 = vsel %vm53, %v174, 0
  %v302 = vsel %vm53, %v175, 0
  %v305 = vsel %vm53, %v176, 0
  %v308 = vsel %vm53, %v177, 0
  %v311 = vsel %vm53, %v178, 0
  %v314 = vsel %vm53, %v179, 0
  %v317 = vsel %vm53, %v180, 0
  %v320 = vsel %vm53, %v181, 0
  %v323 = vsel %vm53, %v182, 0
  %v326 = vsel %vm53, %v183, 0
  %328 = vmatpush.msra.mxu0 0.0
  %329 = vmatpush.msra.mxu0 0.0
  %330 = vmatpush.msra.mxu0 0.0
  %331 = vmatpush.msra.mxu0 0.0
  %332 = vmatpush.msra.mxu0 0.0
  %333 = vmatpush.msra.mxu0 0.0
  %334 = vmatpush.msra.mxu0 0.0
  %335 = vmatpush.msra.mxu0 0.0
  %336 = vmatpush.msra.mxu0 0.0
  %337 = vmatpush.msra.mxu0 0.0
  %338 = vmatpush.msra.mxu0 0.0
  %339 = vmatpush.msra.mxu0 0.0
  %340 = vmatpush.msra.mxu0 0.0
  %341 = vmatpush.msra.mxu0 0.0
  %342 = vmatpush.msra.mxu0 %v164
  %343 = vmatpush.msra.mxu0 %v160
  %344 = vmatmul.f32.gmra.mxu0 %v281
  %v345 = vpop.f32.mrf.mxu0
  %v346 = vadd.f32 %v203, %v345
  %347 = vmatmul.f32.gmra.mxu0 %v284
  %v348 = vpop.f32.mrf.mxu0
  %v349 = vadd.f32 %v208, %v348
  %350 = vmatmul.f32.gmra.mxu0 %v287
  %v351 = vpop.f32.mrf.mxu0
  %v352 = vadd.f32 %v213, %v351
  %353 = vmatmul.f32.gmra.mxu0 %v290
  %v354 = vpop.f32.mrf.mxu0
  %v355 = vadd.f32 %v218, %v354
  %356 = vmatmul.f32.gmra.mxu0 %v293
  %v357 = vpop.f32.mrf.mxu0
  %v358 = vadd.f32 %v223, %v357
  %359 = vmatmul.f32.gmra.mxu0 %v296
  %v360 = vpop.f32.mrf.mxu0
  %v361 = vadd.f32 %v228, %v360
  %362 = vmatmul.f32.gmra.mxu0 %v299
  %v363 = vpop.f32.mrf.mxu0
  %v364 = vadd.f32 %v233, %v363
  %365 = vmatmul.f32.gmra.mxu0 %v302
  %v366 = vpop.f32.mrf.mxu0
  %v367 = vadd.f32 %v238, %v366
  %368 = vmatmul.f32.gmra.mxu0 %v305
  %v369 = vpop.f32.mrf.mxu0
  %v370 = vadd.f32 %v243, %v369
  %371 = vmatmul.f32.gmra.mxu0 %v308
  %v372 = vpop.f32.mrf.mxu0
  %v373 = vadd.f32 %v248, %v372
  %374 = vmatmul.f32.gmra.mxu0 %v311
  %v375 = vpop.f32.mrf.mxu0
  %v376 = vadd.f32 %v253, %v375
  %377 = vmatmul.f32.gmra.mxu0 %v314
  %v378 = vpop.f32.mrf.mxu0
  %v379 = vadd.f32 %v258, %v378
  %380 = vmatmul.f32.gmra.mxu0 %v317
  %v381 = vpop.f32.mrf.mxu0
  %v382 = vadd.f32 %v263, %v381
  %383 = vmatmul.f32.gmra.mxu0 %v320
  %v384 = vpop.f32.mrf.mxu0
  %v385 = vadd.f32 %v268, %v384
  %386 = vmatmul.f32.gmra.mxu0 %v323
  %v387 = vpop.f32.mrf.mxu0
  %v388 = vadd.f32 %v273, %v387
  %389 = vmatmul.f32.gmra.mxu0 %v326
  %v390 = vpop.f32.mrf.mxu0
  %v391 = vadd.f32 %v278, %v390
  %392 = vdwg.mxu0
  %393 = vmatpush.msra.mxu0 0.0
  %394 = vmatpush.msra.mxu0 0.0
  %395 = vmatpush.msra.mxu0 0.0
  %396 = vmatpush.msra.mxu0 0.0
  %397 = vmatpush.msra.mxu0 0.0
  %398 = vmatpush.msra.mxu0 0.0
  %399 = vmatpush.msra.mxu0 0.0
  %400 = vmatpush.msra.mxu0 0.0
  %401 = vmatpush.msra.mxu0 0.0
  %402 = vmatpush.msra.mxu0 0.0
  %403 = vmatpush.msra.mxu0 0.0
  %404 = vmatpush.msra.mxu0 0.0
  %405 = vmatpush.msra.mxu0 0.0
  %406 = vmatpush.msra.mxu0 0.0
  %407 = vmatpush.msra.mxu0 %v165
  %408 = vmatpush.msra.mxu0 %v161
  %409 = vmatmul.f32.gmra.mxu0 %v281
  %v410 = vpop.f32.mrf.mxu0
  %v411 = vadd.f32 %v203, %v410
  %412 = vmatmul.f32.gmra.mxu0 %v284
  %v413 = vpop.f32.mrf.mxu0
  %v414 = vadd.f32 %v208, %v413
  %415 = vmatmul.f32.gmra.mxu0 %v287
  %v416 = vpop.f32.mrf.mxu0
  %v417 = vadd.f32 %v213, %v416
  %418 = vmatmul.f32.gmra.mxu0 %v290
  %v419 = vpop.f32.mrf.mxu0
  %v420 = vadd.f32 %v218, %v419
  %421 = vmatmul.f32.gmra.mxu0 %v293
  %v422 = vpop.f32.mrf.mxu0
  %v423 = vadd.f32 %v223, %v422
  %424 = vmatmul.f32.gmra.mxu0 %v296
  %v425 = vpop.f32.mrf.mxu0
  %v426 = vadd.f32 %v228, %v425
  %427 = vmatmul.f32.gmra.mxu0 %v299
  %v428 = vpop.f32.mrf.mxu0
  %v429 = vadd.f32 %v233, %v428
  %430 = vmatmul.f32.gmra.mxu0 %v302
  %v431 = vpop.f32.mrf.mxu0
  %v432 = vadd.f32 %v238, %v431
  %433 = vmatmul.f32.gmra.mxu0 %v305
  %v434 = vpop.f32.mrf.mxu0
  %v435 = vadd.f32 %v243, %v434
  %436 = vmatmul.f32.gmra.mxu0 %v308
  %v437 = vpop.f32.mrf.mxu0
  %v438 = vadd.f32 %v248, %v437
  %439 = vmatmul.f32.gmra.mxu0 %v311
  %v440 = vpop.f32.mrf.mxu0
  %v441 = vadd.f32 %v253, %v440
  %442 = vmatmul.f32.gmra.mxu0 %v314
  %v443 = vpop.f32.mrf.mxu0
  %v444 = vadd.f32 %v258, %v443
  %445 = vmatmul.f32.gmra.mxu0 %v317
  %v446 = vpop.f32.mrf.mxu0
  %v447 = vadd.f32 %v263, %v446
  %448 = vmatmul.f32.gmra.mxu0 %v320
  %v449 = vpop.f32.mrf.mxu0
  %v450 = vadd.f32 %v268, %v449
  %451 = vmatmul.f32.gmra.mxu0 %v323
  %v452 = vpop.f32.mrf.mxu0
  %v453 = vadd.f32 %v273, %v452
  %454 = vmatmul.f32.gmra.mxu0 %v326
  %v455 = vpop.f32.mrf.mxu0
  %v456 = vadd.f32 %v278, %v455
  %457 = vdwg.mxu0
  %458 = vmatpush.msra.mxu0 0.0
  %459 = vmatpush.msra.mxu0 0.0
  %460 = vmatpush.msra.mxu0 0.0
  %461 = vmatpush.msra.mxu0 0.0
  %462 = vmatpush.msra.mxu0 0.0
  %463 = vmatpush.msra.mxu0 0.0
  %464 = vmatpush.msra.mxu0 0.0
  %465 = vmatpush.msra.mxu0 0.0
  %466 = vmatpush.msra.mxu0 0.0
  %467 = vmatpush.msra.mxu0 0.0
  %468 = vmatpush.msra.mxu0 0.0
  %469 = vmatpush.msra.mxu0 0.0
  %470 = vmatpush.msra.mxu0 0.0
  %471 = vmatpush.msra.mxu0 0.0
  %472 = vmatpush.msra.mxu0 %v166
  %473 = vmatpush.msra.mxu0 %v162
  %474 = vmatmul.f32.gmra.mxu0 %v281
  %v475 = vpop.f32.mrf.mxu0
  %v476 = vadd.f32 %v203, %v475
  %477 = vmatmul.f32.gmra.mxu0 %v284
  %v478 = vpop.f32.mrf.mxu0
  %v479 = vadd.f32 %v208, %v478
  %480 = vmatmul.f32.gmra.mxu0 %v287
  %v481 = vpop.f32.mrf.mxu0
  %v482 = vadd.f32 %v213, %v481
  %483 = vmatmul.f32.gmra.mxu0 %v290
  %v484 = vpop.f32.mrf.mxu0
  %v485 = vadd.f32 %v218, %v484
  %486 = vmatmul.f32.gmra.mxu0 %v293
  %v487 = vpop.f32.mrf.mxu0
  %v488 = vadd.f32 %v223, %v487
  %489 = vmatmul.f32.gmra.mxu0 %v296
  %v490 = vpop.f32.mrf.mxu0
  %v491 = vadd.f32 %v228, %v490
  %492 = vmatmul.f32.gmra.mxu0 %v299
  %v493 = vpop.f32.mrf.mxu0
  %v494 = vadd.f32 %v233, %v493
  %495 = vmatmul.f32.gmra.mxu0 %v302
  %v496 = vpop.f32.mrf.mxu0
  %v497 = vadd.f32 %v238, %v496
  %498 = vmatmul.f32.gmra.mxu0 %v305
  %v499 = vpop.f32.mrf.mxu0
  %v500 = vadd.f32 %v243, %v499
  %501 = vmatmul.f32.gmra.mxu0 %v308
  %v502 = vpop.f32.mrf.mxu0
  %v503 = vadd.f32 %v248, %v502
  %504 = vmatmul.f32.gmra.mxu0 %v311
  %v505 = vpop.f32.mrf.mxu0
  %v506 = vadd.f32 %v253, %v505
  %507 = vmatmul.f32.gmra.mxu0 %v314
  %v508 = vpop.f32.mrf.mxu0
  %v509 = vadd.f32 %v258, %v508
  %510 = vmatmul.f32.gmra.mxu0 %v317
  %v511 = vpop.f32.mrf.mxu0
  %v512 = vadd.f32 %v263, %v511
  %513 = vmatmul.f32.gmra.mxu0 %v320
  %v514 = vpop.f32.mrf.mxu0
  %v515 = vadd.f32 %v268, %v514
  %516 = vmatmul.f32.gmra.mxu0 %v323
  %v517 = vpop.f32.mrf.mxu0
  %v518 = vadd.f32 %v273, %v517
  %519 = vmatmul.f32.gmra.mxu0 %v326
  %v520 = vpop.f32.mrf.mxu0
  %v521 = vadd.f32 %v278, %v520
  %522 = vdwg.mxu0
  %523 = vmatpush.msra.mxu0 0.0
  %524 = vmatpush.msra.mxu0 0.0
  %525 = vmatpush.msra.mxu0 0.0
  %526 = vmatpush.msra.mxu0 0.0
  %527 = vmatpush.msra.mxu0 0.0
  %528 = vmatpush.msra.mxu0 0.0
  %529 = vmatpush.msra.mxu0 0.0
  %530 = vmatpush.msra.mxu0 0.0
  %531 = vmatpush.msra.mxu0 0.0
  %532 = vmatpush.msra.mxu0 0.0
  %533 = vmatpush.msra.mxu0 0.0
  %534 = vmatpush.msra.mxu0 0.0
  %535 = vmatpush.msra.mxu0 0.0
  %536 = vmatpush.msra.mxu0 0.0
  %537 = vmatpush.msra.mxu0 %v167
  %538 = vmatpush.msra.mxu0 %v163
  %539 = vmatmul.f32.gmra.mxu0 %v281
  %v540 = vpop.f32.mrf.mxu0
  %v541 = vadd.f32 %v203, %v540
  %542 = vmatmul.f32.gmra.mxu0 %v284
  %v543 = vpop.f32.mrf.mxu0
  %v544 = vadd.f32 %v208, %v543
  %545 = vmatmul.f32.gmra.mxu0 %v287
  %v546 = vpop.f32.mrf.mxu0
  %v547 = vadd.f32 %v213, %v546
  %548 = vmatmul.f32.gmra.mxu0 %v290
  %v549 = vpop.f32.mrf.mxu0
  %v550 = vadd.f32 %v218, %v549
  %551 = vmatmul.f32.gmra.mxu0 %v293
  %v552 = vpop.f32.mrf.mxu0
  %v553 = vadd.f32 %v223, %v552
  %554 = vmatmul.f32.gmra.mxu0 %v296
  %v555 = vpop.f32.mrf.mxu0
  %v556 = vadd.f32 %v228, %v555
  %557 = vmatmul.f32.gmra.mxu0 %v299
  %v558 = vpop.f32.mrf.mxu0
  %v559 = vadd.f32 %v233, %v558
  %560 = vmatmul.f32.gmra.mxu0 %v302
  %v561 = vpop.f32.mrf.mxu0
  %v562 = vadd.f32 %v238, %v561
  %563 = vmatmul.f32.gmra.mxu0 %v305
  %v564 = vpop.f32.mrf.mxu0
  %v565 = vadd.f32 %v243, %v564
  %566 = vmatmul.f32.gmra.mxu0 %v308
  %v567 = vpop.f32.mrf.mxu0
  %v568 = vadd.f32 %v248, %v567
  %569 = vmatmul.f32.gmra.mxu0 %v311
  %v570 = vpop.f32.mrf.mxu0
  %v571 = vadd.f32 %v253, %v570
  %572 = vmatmul.f32.gmra.mxu0 %v314
  %v573 = vpop.f32.mrf.mxu0
  %v574 = vadd.f32 %v258, %v573
  %575 = vmatmul.f32.gmra.mxu0 %v317
  %v576 = vpop.f32.mrf.mxu0
  %v577 = vadd.f32 %v263, %v576
  %578 = vmatmul.f32.gmra.mxu0 %v320
  %v579 = vpop.f32.mrf.mxu0
  %v580 = vadd.f32 %v268, %v579
  %581 = vmatmul.f32.gmra.mxu0 %v323
  %v582 = vpop.f32.mrf.mxu0
  %v583 = vadd.f32 %v273, %v582
  %584 = vmatmul.f32.gmra.mxu0 %v326
  %v585 = vpop.f32.mrf.mxu0
  %v586 = vadd.f32 %v278, %v585
  %587 = vdwg.mxu0
  %v588 = vmax.f32 %v346, 0.0
  %v589 = vmax.f32 %v411, 0.0
  %v590 = vmax.f32 %v476, 0.0
  %v591 = vmax.f32 %v541, 0.0
  %v592 = vmax.f32 %v349, 0.0
  %v593 = vmax.f32 %v414, 0.0
  %v594 = vmax.f32 %v479, 0.0
  %v595 = vmax.f32 %v544, 0.0
  %v596 = vmax.f32 %v352, 0.0
  %v597 = vmax.f32 %v417, 0.0
  %v598 = vmax.f32 %v482, 0.0
  %v599 = vmax.f32 %v547, 0.0
  %v600 = vmax.f32 %v355, 0.0
  %v601 = vmax.f32 %v420, 0.0
  %v602 = vmax.f32 %v485, 0.0
  %v603 = vmax.f32 %v550, 0.0
  %v604 = vmax.f32 %v358, 0.0
  %v605 = vmax.f32 %v423, 0.0
  %v606 = vmax.f32 %v488, 0.0
  %v607 = vmax.f32 %v553, 0.0
  %v608 = vmax.f32 %v361, 0.0
  %v609 = vmax.f32 %v426, 0.0
  %v610 = vmax.f32 %v491, 0.0
  %v611 = vmax.f32 %v556, 0.0
  %v612 = vmax.f32 %v364, 0.0
  %v613 = vmax.f32 %v429, 0.0
  %v614 = vmax.f32 %v494, 0.0
  %v615 = vmax.f32 %v559, 0.0
  %v616 = vmax.f32 %v367, 0.0
  %v617 = vmax.f32 %v432, 0.0
  %v618 = vmax.f32 %v497, 0.0
  %v619 = vmax.f32 %v562, 0.0
  %v620 = vmax.f32 %v370, 0.0
  %v621 = vmax.f32 %v435, 0.0
  %v622 = vmax.f32 %v500, 0.0
  %v623 = vmax.f32 %v565, 0.0
  %v624 = vmax.f32 %v373, 0.0
  %v625 = vmax.f32 %v438, 0.0
  %v626 = vmax.f32 %v503, 0.0
  %v627 = vmax.f32 %v568, 0.0
  %v628 = vmax.f32 %v376, 0.0
  %v629 = vmax.f32 %v441, 0.0
  %v630 = vmax.f32 %v506, 0.0
  %v631 = vmax.f32 %v571, 0.0
  %v632 = vmax.f32 %v379, 0.0
  %v633 = vmax.f32 %v444, 0.0
  %v634 = vmax.f32 %v509, 0.0
  %v635 = vmax.f32 %v574, 0.0
  %v636 = vmax.f32 %v382, 0.0
  %v637 = vmax.f32 %v447, 0.0
  %v638 = vmax.f32 %v512, 0.0
  %v639 = vmax.f32 %v577, 0.0
  %v640 = vmax.f32 %v385, 0.0
  %v641 = vmax.f32 %v450, 0.0
  %v642 = vmax.f32 %v515, 0.0
  %v643 = vmax.f32 %v580, 0.0
  %v644 = vmax.f32 %v388, 0.0
  %v645 = vmax.f32 %v453, 0.0
  %v646 = vmax.f32 %v518, 0.0
  %v647 = vmax.f32 %v583, 0.0
  %v648 = vmax.f32 %v391, 0.0
  %v649 = vmax.f32 %v456, 0.0
  %v650 = vmax.f32 %v521, 0.0
  %v651 = vmax.f32 %v586, 0.0
  %v652 = vld [vmem:[%s6] sm:$0x1]
  %v653 = vld [vmem:[#allocation2] sm:$0x1]
  %655 = vset.pattern.permute.xlu0 0
  %656 = vperm.xlu0 %655, %v653
  %v657 = vpop.permute.xlu0 %656
  %v659 = vperm.slane %v657, 0
  %660 = vmatpush.msra.mxu0 %v648
  %661 = vmatpush.msra.mxu0 %v644
  %662 = vmatpush.msra.mxu0 %v640
  %663 = vmatpush.msra.mxu0 %v636
  %664 = vmatpush.msra.mxu0 %v632
  %665 = vmatpush.msra.mxu0 %v628
  %666 = vmatpush.msra.mxu0 %v624
  %667 = vmatpush.msra.mxu0 %v620
  %668 = vmatpush.msra.mxu0 %v616
  %669 = vmatpush.msra.mxu0 %v612
  %670 = vmatpush.msra.mxu0 %v608
  %671 = vmatpush.msra.mxu0 %v604
  %672 = vmatpush.msra.mxu0 %v600
  %673 = vmatpush.msra.mxu0 %v596
  %674 = vmatpush.msra.mxu0 %v592
  %675 = vmatpush.msra.mxu0 %v588
  %676 = vmatmul.f32.gmra.mxu0 %v652
  %v677 = vpop.f32.mrf.mxu0
  %v678 = vadd.f32 %v659, %v677
  %679 = vdwg.mxu0
  %680 = vmatpush.msra.mxu0 %v649
  %681 = vmatpush.msra.mxu0 %v645
  %682 = vmatpush.msra.mxu0 %v641
  %683 = vmatpush.msra.mxu0 %v637
  %684 = vmatpush.msra.mxu0 %v633
  %685 = vmatpush.msra.mxu0 %v629
  %686 = vmatpush.msra.mxu0 %v625
  %687 = vmatpush.msra.mxu0 %v621
  %688 = vmatpush.msra.mxu0 %v617
  %689 = vmatpush.msra.mxu0 %v613
  %690 = vmatpush.msra.mxu0 %v609
  %691 = vmatpush.msra.mxu0 %v605
  %692 = vmatpush.msra.mxu0 %v601
  %693 = vmatpush.msra.mxu0 %v597
  %694 = vmatpush.msra.mxu0 %v593
  %695 = vmatpush.msra.mxu0 %v589
  %696 = vmatmul.f32.gmra.mxu0 %v652
  %v697 = vpop.f32.mrf.mxu0
  %v698 = vadd.f32 %v659, %v697
  %699 = vdwg.mxu0
  %700 = vmatpush.msra.mxu0 %v650
  %701 = vmatpush.msra.mxu0 %v646
  %702 = vmatpush.msra.mxu0 %v642
  %703 = vmatpush.msra.mxu0 %v638
  %704 = vmatpush.msra.mxu0 %v634
  %705 = vmatpush.msra.mxu0 %v630
  %706 = vmatpush.msra.mxu0 %v626
  %707 = vmatpush.msra.mxu0 %v622
  %708 = vmatpush.msra.mxu0 %v618
  %709 = vmatpush.msra.mxu0 %v614
  %710 = vmatpush.msra.mxu0 %v610
  %711 = vmatpush.msra.mxu0 %v606
  %712 = vmatpush.msra.mxu0 %v602
  %713 = vmatpush.msra.mxu0 %v598
  %714 = vmatpush.msra.mxu0 %v594
  %715 = vmatpush.msra.mxu0 %v590
  %716 = vmatmul.f32.gmra.mxu0 %v652
  %v717 = vpop.f32.mrf.mxu0
  %v718 = vadd.f32 %v659, %v717
  %719 = vdwg.mxu0
  %720 = vmatpush.msra.mxu0 %v651
  %721 = vmatpush.msra.mxu0 %v647
  %722 = vmatpush.msra.mxu0 %v643
  %723 = vmatpush.msra.mxu0 %v639
  %724 = vmatpush.msra.mxu0 %v635
  %725 = vmatpush.msra.mxu0 %v631
  %726 = vmatpush.msra.mxu0 %v627
  %727 = vmatpush.msra.mxu0 %v623
  %728 = vmatpush.msra.mxu0 %v619
  %729 = vmatpush.msra.mxu0 %v615
  %730 = vmatpush.msra.mxu0 %v611
  %731 = vmatpush.msra.mxu0 %v607
  %732 = vmatpush.msra.mxu0 %v603
  %733 = vmatpush.msra.mxu0 %v599
  %734 = vmatpush.msra.mxu0 %v595
  %735 = vmatpush.msra.mxu0 %v591
  %736 = vmatmul.f32.gmra.mxu0 %v652
  %v737 = vpop.f32.mrf.mxu0
  %v738 = vadd.f32 %v659, %v737
  %739 = vdwg.mxu0
  %v744 = vrot.slane %v698, 7
  %v745 = vrot.slane %v718, 6
  %v746 = vrot.slane %v738, 5
  %vm747 = vcmask 1040384
  %v748 = vsel %vm747, %v678, %v744
  %vm749 = vcmask 1042434
  %v750 = vsel %vm749, %v745, %v746
  %vm751 = vcmask 1041408
  %v752 = vsel %vm751, %v748, %v750
  %v754 = vlaneseq
  %vm755 = vcmp.ge.s32.totalorder %v754, 0
  %vm756 = vcmp.lt.s32.totalorder %v754, 512
  %vm757 = vmand %vm755, %vm756
  %758 = vst.msk [vmem:[%s8] sm:$0xf] %vm757, %v752
  // Predicated region
  $region34: #{fno2d_forward.17} parent=0 // pred_check
    _
  $region35: #{fno2d_forward.17} parent=0 // pred_check_branch
    %760 = sbr.rel (0) target = $region37
  $region36: #{fno2d_forward.17} parent=0 // pred_region
    _
  $region37: #{fno2d_forward.17} parent=0 // pred_fallthru
    _
  // Predicated region
  $region38: #{fno2d_forward.17} parent=0 // pred_check
    _
  $region39: #{fno2d_forward.17} parent=0 // pred_check_branch
    %762 = sbr.rel (0) target = $region41
  $region40: #{fno2d_forward.17} parent=0 // pred_region
    _
  $region41: #{fno2d_forward.17} parent=0 // pred_fallthru
    _

</llo_original>
